<compile_context>
chip_gen: v5e
topology: v5e:2x2
jax: 0.10.0
libtpu: 0.0.40
codegen_flags: <defaults>
</compile_context>

<pallas_src>
import jax
import jax.numpy as jnp
from jax import lax
from jax.experimental import pallas as pl
from jax.experimental.pallas import tpu as pltpu

# Keep the tiny wrapper-side contractions and the pure-JAX reference in true f32.
jax.config.update("jax_default_matmul_precision", "highest")

EPS = 1e-5


def moments_kernel(x_ref, stats_ref, acc_ref):
    """Accumulate per-channel first/second moments of x over the spatial tiles.

    acc_ref planes (VMEM scratch, shape (9, TH, W)):
        0..2 : sum over pixels of x_c
        3..8 : sum over pixels of x_i * x_j for (i,j) in
               (0,0),(0,1),(0,2),(1,1),(1,2),(2,2)   (upper triangle only)

    The (1, 9, 128) stats block is written only on the last spatial tile of each
    image: each accumulator plane is reduced to a scalar (XLU slots, off the
    VALU critical path) and broadcast across the 128 lanes.
    """
    t = pl.program_id(1)

    @pl.when(t == 0)
    def _init():
        acc_ref[...] = jnp.zeros_like(acc_ref)

    x = x_ref[0]                       # (3, TH, W): one dense plane per channel
    x0, x1, x2 = x[0], x[1], x[2]

    acc_ref[0] += x0
    acc_ref[1] += x1
    acc_ref[2] += x2
    acc_ref[3] += x0 * x0
    acc_ref[4] += x0 * x1
    acc_ref[5] += x0 * x2
    acc_ref[6] += x1 * x1
    acc_ref[7] += x1 * x2
    acc_ref[8] += x2 * x2

    @pl.when(t == pl.num_programs(1) - 1)
    def _finalize():
        rows = []
        for k in range(9):
            s = jnp.sum(acc_ref[k], axis=1, keepdims=True)   # lane reduce    -> (TH, 1)
            s = jnp.sum(s, axis=0, keepdims=True)            # sublane reduce -> (1, 1)
            rows.append(jnp.broadcast_to(s, (1, 128)))
        stats_ref[0] = jnp.concatenate(rows, axis=0)         # (9, 128)


def affine_apply_kernel(w_ref, b_ref, x_ref, o_ref):
    """o[n, oc, h, w] = sum_c w_eff[oc, c] * x[n, c, h, w] + b_eff[oc].

    w_ref (8,3) / b_ref (8,) live in SMEM; their scalars are splatted against
    dense (TH, W) channel planes — 3 VPU broadcast-FMAs per output channel,
    no MXU for this tiny-K contraction.
    """
    x = x_ref[0]                       # (3, TH, W)
    x0, x1, x2 = x[0], x[1], x[2]
    for oc in range(8):
        o_ref[0, oc] = (w_ref[oc, 0] * x0 + w_ref[oc, 1] * x1
                        + w_ref[oc, 2] * x2 + b_ref[oc])


def _pick_row_tile(H, W, max_block_elems=32768):
    """Largest TH with TH | H, TH*W <= max_block_elems and (TH == H or TH % 8 == 0)."""
    if H * W <= max_block_elems:
        return H
    best = None
    for th in range(8, H, 8):
        if H % th == 0 and th * W <= max_block_elems:
            best = th
    return best if best is not None else H


def resblock_forward(x_nchw, params, max_block_elems=32768):
    """Forward pass of ResBlock with training-mode (batch-statistics) BatchNorm."""
    N, C, H, W = x_nchw.shape
    assert C == 3
    x = x_nchw.astype(jnp.float32)
    TH = _pick_row_tile(H, W, max_block_elems)
    n_tiles = H // TH
    M_total = N * H * W

    # -------- pass 1: per-channel first & second moments of x (one stream) ---
    stats = pl.pallas_call(
        moments_kernel,
        out_shape=jax.ShapeDtypeStruct((N, 9, 128), jnp.float32),
        grid=(N, n_tiles),
        in_specs=[pl.BlockSpec((1, C, TH, W), lambda n, t: (n, 0, t, 0))],
        out_specs=pl.BlockSpec((1, 9, 128), lambda n, t: (n, 0, 0)),
        scratch_shapes=[pltpu.VMEM((9, TH, W), jnp.float32)],
        compiler_params=pltpu.CompilerParams(
            dimension_semantics=("parallel", "arbitrary")),
    )(x)

    sums = stats[:, :, 0].sum(axis=0)                  # (9,): fold per-image partials
    mu = sums[0:3] / M_total                           # E[x_c]
    p = sums[3:9] / M_total                            # unique E[x_i x_j]
    second = jnp.array([[p[0], p[1], p[2]],
                        [p[1], p[3], p[4]],
                        [p[2], p[4], p[5]]])
    cov = second - jnp.outer(mu, mu)                   # Cov[x_i, x_j]

    # ------ fold conv1/bn1/conv2/bn2/conv3 into one affine map of x ----------
    (w1, b1, g1, be1, w2, b2, g2, be2, w3, b3) = params
    del b1, b2            # cancel exactly against the BN batch-mean subtraction

    w1t = w1.T                                         # (8, 3): h1 = w1t @ x (+ b1)
    mean1 = w1t @ mu
    var1 = jnp.einsum("oi,ij,oj->o", w1t, cov, w1t)    # biased batch variance of h1
    s1 = g1.reshape(-1) * lax.rsqrt(var1 + EPS)
    a1 = s1[:, None] * w1t                             # x1 = a1 @ x + c1
    c1 = be1.reshape(-1) - s1 * mean1

    w2t = w2.T                                         # (8, 8)
    b2a = w2t @ a1                                     # h2 = b2a @ x + d2 (+ b2)
    d2 = w2t @ c1
    mean2 = b2a @ mu + d2
    var2 = jnp.einsum("oi,ij,oj->o", b2a, cov, b2a)
    s2 = g2.reshape(-1) * lax.rsqrt(var2 + EPS)
    a2 = s2[:, None] * b2a                             # x2 = a2 @ x + c2
    c2 = be2.reshape(-1) + s2 * (d2 - mean2)

    w3t = w3.T
    w_eff = w3t @ (a2 + a1)                            # (8, 3)
    b_eff = w3t @ (c2 + c1) + b3.reshape(-1)           # (8,)

    # -------- pass 2: streamed affine apply, written directly in NCHW --------
    out = pl.pallas_call(
        affine_apply_kernel,
        out_shape=jax.ShapeDtypeStruct((N, 8, H, W), jnp.float32),
        grid=(N, n_tiles),
        in_specs=[
            pl.BlockSpec(memory_space=pltpu.MemorySpace.SMEM),   # w_eff (8, 3)
            pl.BlockSpec(memory_space=pltpu.MemorySpace.SMEM),   # b_eff (8,)
            pl.BlockSpec((1, C, TH, W), lambda n, t: (n, 0, t, 0)),
        ],
        out_specs=pl.BlockSpec((1, 8, TH, W), lambda n, t: (n, 0, t, 0)),
        compiler_params=pltpu.CompilerParams(
            dimension_semantics=("parallel", "parallel")),
    )(w_eff, b_eff, x)
    return out


def make_params(key):
    """Deterministic synthetic parameters matching the module's shapes.

    Conv2d(Cin, Cout, 1) weight (Cout, Cin, 1, 1) is stored transposed as
    (Cin, Cout); conv biases / BN params are (1, Cout)."""
    ks = jax.random.split(key, 10)
    w1 = jax.random.normal(ks[0], (3, 8), jnp.float32) * 0.3
    b1 = jax.random.normal(ks[1], (1, 8), jnp.float32) * 0.1
    g1 = 1.0 + 0.1 * jax.random.normal(ks[2], (1, 8), jnp.float32)
    be1 = 0.1 * jax.random.normal(ks[3], (1, 8), jnp.float32)
    w2 = jax.random.normal(ks[4], (8, 8), jnp.float32) * 0.3
    b2 = jax.random.normal(ks[5], (1, 8), jnp.float32) * 0.1
    g2 = 1.0 + 0.1 * jax.random.normal(ks[6], (1, 8), jnp.float32)
    be2 = 0.1 * jax.random.normal(ks[7], (1, 8), jnp.float32)
    w3 = jax.random.normal(ks[8], (8, 8), jnp.float32) * 0.3
    b3 = jax.random.normal(ks[9], (1, 8), jnp.float32) * 0.1
    return (w1, b1, g1, be1, w2, b2, g2, be2, w3, b3)


def reference_forward(x_nchw, params):
    """Pure-JAX reference mirroring the PyTorch module (training-mode BN)."""
    (w1, b1, g1, be1, w2, b2, g2, be2, w3, b3) = params
    N, C, H, W = x_nchw.shape
    x = jnp.transpose(x_nchw, (0, 2, 3, 1)).reshape(-1, C)

    def bn(h, g, be):
        m = jnp.mean(h, axis=0, keepdims=True)
        v = jnp.mean((h - m) ** 2, axis=0, keepdims=True)   # biased variance
        return (h - m) / jnp.sqrt(v + EPS) * g + be

    x1 = bn(x @ w1 + b1, g1, be1)
    x2 = bn(x1 @ w2 + b2, g2, be2)
    x3 = (x2 + x1) @ w3 + b3
    return x3.reshape(N, H, W, 8).transpose(0, 3, 1, 2)


if __name__ == "__main__":
    key = jax.random.PRNGKey(0)
    kx, kx2, kp = jax.random.split(key, 3)
    params = make_params(kp)

    fwd = jax.jit(resblock_forward)

    # Main case: N=2, C=3, H=W=32 -> one (32, 32) plane-tile per image,
    # batch axis parallel across TensorCores on v7x.
    x = jax.random.normal(kx, (2, 3, 32, 32), jnp.float32)
    out = jax.block_until_ready(fwd(x, params))
    ref = reference_forward(x, params)
    assert out.shape == (2, 8, 32, 32)
    assert jnp.allclose(out, ref, atol=1e-3, rtol=1e-3)

    # Ragged case: odd spatial size -> full-dim blocks, no padding anywhere.
    x_odd = jax.random.normal(kx2, (1, 3, 10, 10), jnp.float32)
    out_odd = jax.block_until_ready(fwd(x_odd, params))
    ref_odd = reference_forward(x_odd, params)
    assert out_odd.shape == (1, 8, 10, 10)
    assert jnp.allclose(out_odd, ref_odd, atol=1e-3, rtol=1e-3)

    print("KERNEL_OK")
</pallas_src>

<mosaic_0001>
module attributes {stable_mosaic.version = 11 : i64} {
  func.func @moments_kernel(%arg0: i32, %arg1: i32, %arg2: memref<1x3x32x32xf32, #tpu.memory_space<vmem>>, %arg3: memref<1x9x128xf32, #tpu.memory_space<vmem>>, %arg4: memref<9x32x32xf32, #tpu.memory_space<vmem>>) attributes {dimension_semantics = [#tpu.dimension_semantics<parallel>, #tpu.dimension_semantics<arbitrary>], iteration_bounds = array<i64: 2, 1>, scalar_prefetch = 0 : i64, scratch_operands = 1 : i64, tpu.core_type = #tpu.core_type<tc>, window_params = [{transform_indices = @transform_0, window_bounds = array<i64: 1, 3, 32, 32>}, {transform_indices = @transform_1, window_bounds = array<i64: 1, 9, 128>}]} {
    %c0_i32 = arith.constant 0 : i32
    %0 = arith.cmpi eq, %arg1, %c0_i32 : i32
    %1 = arith.extui %0 : i1 to i32
    %c0_i32_0 = arith.constant 0 : i32
    %2 = arith.cmpi ne, %1, %c0_i32_0 : i32
    scf.if %2 {
      %cst = arith.constant 0.000000e+00 : f32
      %74 = vector.broadcast %cst : f32 to vector<9x32x32xf32>
      %c0_52 = arith.constant 0 : index
      %c0_53 = arith.constant 0 : index
      %c0_54 = arith.constant 0 : index
      %75 = vector.load %arg4[%c0_52, %c0_53, %c0_54] : memref<9x32x32xf32, #tpu.memory_space<vmem>>, vector<9x32x32xf32>
      tpu.vector_store %arg4[%c0_52, %c0_53, %c0_54], %74 {strides = array<i32>} : memref<9x32x32xf32, #tpu.memory_space<vmem>>, vector<9x32x32xf32>,
    } else {
    }
    %c0 = arith.constant 0 : index
    %c0_1 = arith.constant 0 : index
    %c0_2 = arith.constant 0 : index
    %c0_3 = arith.constant 0 : index
    %3 = vector.load %arg2[%c0, %c0_1, %c0_2, %c0_3] : memref<1x3x32x32xf32, #tpu.memory_space<vmem>>, vector<1x3x32x32xf32>
    %4 = vector.shape_cast %3 : vector<1x3x32x32xf32> to vector<3x32x32xf32>
    %5 = vector.extract_strided_slice %4 {offsets = [0, 0, 0], sizes = [1, 32, 32], strides = [1, 1, 1]} : vector<3x32x32xf32> to vector<1x32x32xf32>
    %6 = vector.shape_cast %5 : vector<1x32x32xf32> to vector<32x32xf32>
    %7 = vector.extract_strided_slice %4 {offsets = [1, 0, 0], sizes = [1, 32, 32], strides = [1, 1, 1]} : vector<3x32x32xf32> to vector<1x32x32xf32>
    %8 = vector.shape_cast %7 : vector<1x32x32xf32> to vector<32x32xf32>
    %9 = vector.extract_strided_slice %4 {offsets = [2, 0, 0], sizes = [1, 32, 32], strides = [1, 1, 1]} : vector<3x32x32xf32> to vector<1x32x32xf32>
    %10 = vector.shape_cast %9 : vector<1x32x32xf32> to vector<32x32xf32>
    %c0_4 = arith.constant 0 : index
    %c0_5 = arith.constant 0 : index
    %c0_6 = arith.constant 0 : index
    %11 = vector.load %arg4[%c0_4, %c0_5, %c0_6] : memref<9x32x32xf32, #tpu.memory_space<vmem>>, vector<1x32x32xf32>
    %12 = vector.shape_cast %11 : vector<1x32x32xf32> to vector<32x32xf32>
    %13 = arith.addf %12, %6 : vector<32x32xf32>
    %c0_7 = arith.constant 0 : index
    %c0_8 = arith.constant 0 : index
    %c0_9 = arith.constant 0 : index
    %14 = vector.load %arg4[%c0_7, %c0_8, %c0_9] : memref<9x32x32xf32, #tpu.memory_space<vmem>>, vector<1x32x32xf32>
    %15 = vector.shape_cast %14 : vector<1x32x32xf32> to vector<32x32xf32>
    %16 = vector.shape_cast %13 : vector<32x32xf32> to vector<1x32x32xf32>
    tpu.vector_store %arg4[%c0_7, %c0_8, %c0_9], %16 {strides = array<i32>} : memref<9x32x32xf32, #tpu.memory_space<vmem>>, vector<1x32x32xf32>,
    %c1 = arith.constant 1 : index
    %c0_10 = arith.constant 0 : index
    %c0_11 = arith.constant 0 : index
    %17 = vector.load %arg4[%c1, %c0_10, %c0_11] : memref<9x32x32xf32, #tpu.memory_space<vmem>>, vector<1x32x32xf32>
    %18 = vector.shape_cast %17 : vector<1x32x32xf32> to vector<32x32xf32>
    %19 = arith.addf %18, %8 : vector<32x32xf32>
    %c1_12 = arith.constant 1 : index
    %c0_13 = arith.constant 0 : index
    %c0_14 = arith.constant 0 : index
    %20 = vector.load %arg4[%c1_12, %c0_13, %c0_14] : memref<9x32x32xf32, #tpu.memory_space<vmem>>, vector<1x32x32xf32>
    %21 = vector.shape_cast %20 : vector<1x32x32xf32> to vector<32x32xf32>
    %22 = vector.shape_cast %19 : vector<32x32xf32> to vector<1x32x32xf32>
    tpu.vector_store %arg4[%c1_12, %c0_13, %c0_14], %22 {strides = array<i32>} : memref<9x32x32xf32, #tpu.memory_space<vmem>>, vector<1x32x32xf32>,
    %c2 = arith.constant 2 : index
    %c0_15 = arith.constant 0 : index
    %c0_16 = arith.constant 0 : index
    %23 = vector.load %arg4[%c2, %c0_15, %c0_16] : memref<9x32x32xf32, #tpu.memory_space<vmem>>, vector<1x32x32xf32>
    %24 = vector.shape_cast %23 : vector<1x32x32xf32> to vector<32x32xf32>
    %25 = arith.addf %24, %10 : vector<32x32xf32>
    %c2_17 = arith.constant 2 : index
    %c0_18 = arith.constant 0 : index
    %c0_19 = arith.constant 0 : index
    %26 = vector.load %arg4[%c2_17, %c0_18, %c0_19] : memref<9x32x32xf32, #tpu.memory_space<vmem>>, vector<1x32x32xf32>
    %27 = vector.shape_cast %26 : vector<1x32x32xf32> to vector<32x32xf32>
    %28 = vector.shape_cast %25 : vector<32x32xf32> to vector<1x32x32xf32>
    tpu.vector_store %arg4[%c2_17, %c0_18, %c0_19], %28 {strides = array<i32>} : memref<9x32x32xf32, #tpu.memory_space<vmem>>, vector<1x32x32xf32>,
    %c3 = arith.constant 3 : index
    %c0_20 = arith.constant 0 : index
    %c0_21 = arith.constant 0 : index
    %29 = vector.load %arg4[%c3, %c0_20, %c0_21] : memref<9x32x32xf32, #tpu.memory_space<vmem>>, vector<1x32x32xf32>
    %30 = vector.shape_cast %29 : vector<1x32x32xf32> to vector<32x32xf32>
    %31 = arith.mulf %6, %6 : vector<32x32xf32>
    %32 = arith.addf %30, %31 : vector<32x32xf32>
    %c3_22 = arith.constant 3 : index
    %c0_23 = arith.constant 0 : index
    %c0_24 = arith.constant 0 : index
    %33 = vector.load %arg4[%c3_22, %c0_23, %c0_24] : memref<9x32x32xf32, #tpu.memory_space<vmem>>, vector<1x32x32xf32>
    %34 = vector.shape_cast %33 : vector<1x32x32xf32> to vector<32x32xf32>
    %35 = vector.shape_cast %32 : vector<32x32xf32> to vector<1x32x32xf32>
    tpu.vector_store %arg4[%c3_22, %c0_23, %c0_24], %35 {strides = array<i32>} : memref<9x32x32xf32, #tpu.memory_space<vmem>>, vector<1x32x32xf32>,
    %c4 = arith.constant 4 : index
    %c0_25 = arith.constant 0 : index
    %c0_26 = arith.constant 0 : index
    %36 = vector.load %arg4[%c4, %c0_25, %c0_26] : memref<9x32x32xf32, #tpu.memory_space<vmem>>, vector<1x32x32xf32>
    %37 = vector.shape_cast %36 : vector<1x32x32xf32> to vector<32x32xf32>
    %38 = arith.mulf %6, %8 : vector<32x32xf32>
    %39 = arith.addf %37, %38 : vector<32x32xf32>
    %c4_27 = arith.constant 4 : index
    %c0_28 = arith.constant 0 : index
    %c0_29 = arith.constant 0 : index
    %40 = vector.load %arg4[%c4_27, %c0_28, %c0_29] : memref<9x32x32xf32, #tpu.memory_space<vmem>>, vector<1x32x32xf32>
    %41 = vector.shape_cast %40 : vector<1x32x32xf32> to vector<32x32xf32>
    %42 = vector.shape_cast %39 : vector<32x32xf32> to vector<1x32x32xf32>
    tpu.vector_store %arg4[%c4_27, %c0_28, %c0_29], %42 {strides = array<i32>} : memref<9x32x32xf32, #tpu.memory_space<vmem>>, vector<1x32x32xf32>,
    %c5 = arith.constant 5 : index
    %c0_30 = arith.constant 0 : index
    %c0_31 = arith.constant 0 : index
    %43 = vector.load %arg4[%c5, %c0_30, %c0_31] : memref<9x32x32xf32, #tpu.memory_space<vmem>>, vector<1x32x32xf32>
    %44 = vector.shape_cast %43 : vector<1x32x32xf32> to vector<32x32xf32>
    %45 = arith.mulf %6, %10 : vector<32x32xf32>
    %46 = arith.addf %44, %45 : vector<32x32xf32>
    %c5_32 = arith.constant 5 : index
    %c0_33 = arith.constant 0 : index
    %c0_34 = arith.constant 0 : index
    %47 = vector.load %arg4[%c5_32, %c0_33, %c0_34] : memref<9x32x32xf32, #tpu.memory_space<vmem>>, vector<1x32x32xf32>
    %48 = vector.shape_cast %47 : vector<1x32x32xf32> to vector<32x32xf32>
    %49 = vector.shape_cast %46 : vector<32x32xf32> to vector<1x32x32xf32>
    tpu.vector_store %arg4[%c5_32, %c0_33, %c0_34], %49 {strides = array<i32>} : memref<9x32x32xf32, #tpu.memory_space<vmem>>, vector<1x32x32xf32>,
    %c6 = arith.constant 6 : index
    %c0_35 = arith.constant 0 : index
    %c0_36 = arith.constant 0 : index
    %50 = vector.load %arg4[%c6, %c0_35, %c0_36] : memref<9x32x32xf32, #tpu.memory_space<vmem>>, vector<1x32x32xf32>
    %51 = vector.shape_cast %50 : vector<1x32x32xf32> to vector<32x32xf32>
    %52 = arith.mulf %8, %8 : vector<32x32xf32>
    %53 = arith.addf %51, %52 : vector<32x32xf32>
    %c6_37 = arith.constant 6 : index
    %c0_38 = arith.constant 0 : index
    %c0_39 = arith.constant 0 : index
    %54 = vector.load %arg4[%c6_37, %c0_38, %c0_39] : memref<9x32x32xf32, #tpu.memory_space<vmem>>, vector<1x32x32xf32>
    %55 = vector.shape_cast %54 : vector<1x32x32xf32> to vector<32x32xf32>
    %56 = vector.shape_cast %53 : vector<32x32xf32> to vector<1x32x32xf32>
    tpu.vector_store %arg4[%c6_37, %c0_38, %c0_39], %56 {strides = array<i32>} : memref<9x32x32xf32, #tpu.memory_space<vmem>>, vector<1x32x32xf32>,
    %c7 = arith.constant 7 : index
    %c0_40 = arith.constant 0 : index
    %c0_41 = arith.constant 0 : index
    %57 = vector.load %arg4[%c7, %c0_40, %c0_41] : memref<9x32x32xf32, #tpu.memory_space<vmem>>, vector<1x32x32xf32>
    %58 = vector.shape_cast %57 : vector<1x32x32xf32> to vector<32x32xf32>
    %59 = arith.mulf %8, %10 : vector<32x32xf32>
    %60 = arith.addf %58, %59 : vector<32x32xf32>
    %c7_42 = arith.constant 7 : index
    %c0_43 = arith.constant 0 : index
    %c0_44 = arith.constant 0 : index
    %61 = vector.load %arg4[%c7_42, %c0_43, %c0_44] : memref<9x32x32xf32, #tpu.memory_space<vmem>>, vector<1x32x32xf32>
    %62 = vector.shape_cast %61 : vector<1x32x32xf32> to vector<32x32xf32>
    %63 = vector.shape_cast %60 : vector<32x32xf32> to vector<1x32x32xf32>
    tpu.vector_store %arg4[%c7_42, %c0_43, %c0_44], %63 {strides = array<i32>} : memref<9x32x32xf32, #tpu.memory_space<vmem>>, vector<1x32x32xf32>,
    %c8 = arith.constant 8 : index
    %c0_45 = arith.constant 0 : index
    %c0_46 = arith.constant 0 : index
    %64 = vector.load %arg4[%c8, %c0_45, %c0_46] : memref<9x32x32xf32, #tpu.memory_space<vmem>>, vector<1x32x32xf32>
    %65 = vector.shape_cast %64 : vector<1x32x32xf32> to vector<32x32xf32>
    %66 = arith.mulf %10, %10 : vector<32x32xf32>
    %67 = arith.addf %65, %66 : vector<32x32xf32>
    %c8_47 = arith.constant 8 : index
    %c0_48 = arith.constant 0 : index
    %c0_49 = arith.constant 0 : index
    %68 = vector.load %arg4[%c8_47, %c0_48, %c0_49] : memref<9x32x32xf32, #tpu.memory_space<vmem>>, vector<1x32x32xf32>
    %69 = vector.shape_cast %68 : vector<1x32x32xf32> to vector<32x32xf32>
    %70 = vector.shape_cast %67 : vector<32x32xf32> to vector<1x32x32xf32>
    tpu.vector_store %arg4[%c8_47, %c0_48, %c0_49], %70 {strides = array<i32>} : memref<9x32x32xf32, #tpu.memory_space<vmem>>, vector<1x32x32xf32>,
    %c0_i32_50 = arith.constant 0 : i32
    %71 = arith.cmpi eq, %arg1, %c0_i32_50 : i32
    %72 = arith.extui %71 : i1 to i32
    %c0_i32_51 = arith.constant 0 : i32
    %73 = arith.cmpi ne, %72, %c0_i32_51 : i32
    scf.if %73 {
      %c0_52 = arith.constant 0 : index
      %c0_53 = arith.constant 0 : index
      %c0_54 = arith.constant 0 : index
      %74 = vector.load %arg4[%c0_52, %c0_53, %c0_54] : memref<9x32x32xf32, #tpu.memory_space<vmem>>, vector<1x32x32xf32>
      %75 = vector.shape_cast %74 : vector<1x32x32xf32> to vector<32x32xf32>
      %cst = arith.constant dense<0.000000e+00> : vector<32xf32>
      %76 = vector.multi_reduction <add>, %75, %cst [1] : vector<32x32xf32> to vector<32xf32>
      %77 = vector.shape_cast %76 : vector<32xf32> to vector<32x1xf32>
      %cst_55 = arith.constant dense<0.000000e+00> : vector<1xf32>
      %78 = vector.multi_reduction <add>, %77, %cst_55 [0] : vector<32x1xf32> to vector<1xf32>
      %79 = vector.shape_cast %78 : vector<1xf32> to vector<1x1xf32>
      %80 = vector.shape_cast %79 : vector<1x1xf32> to vector<1x1xf32>
      %81 = vector.broadcast %80 : vector<1x1xf32> to vector<1x128xf32>
      %c1_56 = arith.constant 1 : index
      %c0_57 = arith.constant 0 : index
      %c0_58 = arith.constant 0 : index
      %82 = vector.load %arg4[%c1_56, %c0_57, %c0_58] : memref<9x32x32xf32, #tpu.memory_space<vmem>>, vector<1x32x32xf32>
      %83 = vector.shape_cast %82 : vector<1x32x32xf32> to vector<32x32xf32>
      %cst_59 = arith.constant dense<0.000000e+00> : vector<32xf32>
      %84 = vector.multi_reduction <add>, %83, %cst_59 [1] : vector<32x32xf32> to vector<32xf32>
      %85 = vector.shape_cast %84 : vector<32xf32> to vector<32x1xf32>
      %cst_60 = arith.constant dense<0.000000e+00> : vector<1xf32>
      %86 = vector.multi_reduction <add>, %85, %cst_60 [0] : vector<32x1xf32> to vector<1xf32>
      %87 = vector.shape_cast %86 : vector<1xf32> to vector<1x1xf32>
      %88 = vector.shape_cast %87 : vector<1x1xf32> to vector<1x1xf32>
      %89 = vector.broadcast %88 : vector<1x1xf32> to vector<1x128xf32>
      %c2_61 = arith.constant 2 : index
      %c0_62 = arith.constant 0 : index
      %c0_63 = arith.constant 0 : index
      %90 = vector.load %arg4[%c2_61, %c0_62, %c0_63] : memref<9x32x32xf32, #tpu.memory_space<vmem>>, vector<1x32x32xf32>
      %91 = vector.shape_cast %90 : vector<1x32x32xf32> to vector<32x32xf32>
      %cst_64 = arith.constant dense<0.000000e+00> : vector<32xf32>
      %92 = vector.multi_reduction <add>, %91, %cst_64 [1] : vector<32x32xf32> to vector<32xf32>
      %93 = vector.shape_cast %92 : vector<32xf32> to vector<32x1xf32>
      %cst_65 = arith.constant dense<0.000000e+00> : vector<1xf32>
      %94 = vector.multi_reduction <add>, %93, %cst_65 [0] : vector<32x1xf32> to vector<1xf32>
      %95 = vector.shape_cast %94 : vector<1xf32> to vector<1x1xf32>
      %96 = vector.shape_cast %95 : vector<1x1xf32> to vector<1x1xf32>
      %97 = vector.broadcast %96 : vector<1x1xf32> to vector<1x128xf32>
      %c3_66 = arith.constant 3 : index
      %c0_67 = arith.constant 0 : index
      %c0_68 = arith.constant 0 : index
      %98 = vector.load %arg4[%c3_66, %c0_67, %c0_68] : memref<9x32x32xf32, #tpu.memory_space<vmem>>, vector<1x32x32xf32>
      %99 = vector.shape_cast %98 : vector<1x32x32xf32> to vector<32x32xf32>
      %cst_69 = arith.constant dense<0.000000e+00> : vector<32xf32>
      %100 = vector.multi_reduction <add>, %99, %cst_69 [1] : vector<32x32xf32> to vector<32xf32>
      %101 = vector.shape_cast %100 : vector<32xf32> to vector<32x1xf32>
      %cst_70 = arith.constant dense<0.000000e+00> : vector<1xf32>
      %102 = vector.multi_reduction <add>, %101, %cst_70 [0] : vector<32x1xf32> to vector<1xf32>
      %103 = vector.shape_cast %102 : vector<1xf32> to vector<1x1xf32>
      %104 = vector.shape_cast %103 : vector<1x1xf32> to vector<1x1xf32>
      %105 = vector.broadcast %104 : vector<1x1xf32> to vector<1x128xf32>
      %c4_71 = arith.constant 4 : index
      %c0_72 = arith.constant 0 : index
      %c0_73 = arith.constant 0 : index
      %106 = vector.load %arg4[%c4_71, %c0_72, %c0_73] : memref<9x32x32xf32, #tpu.memory_space<vmem>>, vector<1x32x32xf32>
      %107 = vector.shape_cast %106 : vector<1x32x32xf32> to vector<32x32xf32>
      %cst_74 = arith.constant dense<0.000000e+00> : vector<32xf32>
      %108 = vector.multi_reduction <add>, %107, %cst_74 [1] : vector<32x32xf32> to vector<32xf32>
      %109 = vector.shape_cast %108 : vector<32xf32> to vector<32x1xf32>
      %cst_75 = arith.constant dense<0.000000e+00> : vector<1xf32>
      %110 = vector.multi_reduction <add>, %109, %cst_75 [0] : vector<32x1xf32> to vector<1xf32>
      %111 = vector.shape_cast %110 : vector<1xf32> to vector<1x1xf32>
      %112 = vector.shape_cast %111 : vector<1x1xf32> to vector<1x1xf32>
      %113 = vector.broadcast %112 : vector<1x1xf32> to vector<1x128xf32>
      %c5_76 = arith.constant 5 : index
      %c0_77 = arith.constant 0 : index
      %c0_78 = arith.constant 0 : index
      %114 = vector.load %arg4[%c5_76, %c0_77, %c0_78] : memref<9x32x32xf32, #tpu.memory_space<vmem>>, vector<1x32x32xf32>
      %115 = vector.shape_cast %114 : vector<1x32x32xf32> to vector<32x32xf32>
      %cst_79 = arith.constant dense<0.000000e+00> : vector<32xf32>
      %116 = vector.multi_reduction <add>, %115, %cst_79 [1] : vector<32x32xf32> to vector<32xf32>
      %117 = vector.shape_cast %116 : vector<32xf32> to vector<32x1xf32>
      %cst_80 = arith.constant dense<0.000000e+00> : vector<1xf32>
      %118 = vector.multi_reduction <add>, %117, %cst_80 [0] : vector<32x1xf32> to vector<1xf32>
      %119 = vector.shape_cast %118 : vector<1xf32> to vector<1x1xf32>
      %120 = vector.shape_cast %119 : vector<1x1xf32> to vector<1x1xf32>
      %121 = vector.broadcast %120 : vector<1x1xf32> to vector<1x128xf32>
      %c6_81 = arith.constant 6 : index
      %c0_82 = arith.constant 0 : index
      %c0_83 = arith.constant 0 : index
      %122 = vector.load %arg4[%c6_81, %c0_82, %c0_83] : memref<9x32x32xf32, #tpu.memory_space<vmem>>, vector<1x32x32xf32>
      %123 = vector.shape_cast %122 : vector<1x32x32xf32> to vector<32x32xf32>
      %cst_84 = arith.constant dense<0.000000e+00> : vector<32xf32>
      %124 = vector.multi_reduction <add>, %123, %cst_84 [1] : vector<32x32xf32> to vector<32xf32>
      %125 = vector.shape_cast %124 : vector<32xf32> to vector<32x1xf32>
      %cst_85 = arith.constant dense<0.000000e+00> : vector<1xf32>
      %126 = vector.multi_reduction <add>, %125, %cst_85 [0] : vector<32x1xf32> to vector<1xf32>
      %127 = vector.shape_cast %126 : vector<1xf32> to vector<1x1xf32>
      %128 = vector.shape_cast %127 : vector<1x1xf32> to vector<1x1xf32>
      %129 = vector.broadcast %128 : vector<1x1xf32> to vector<1x128xf32>
      %c7_86 = arith.constant 7 : index
      %c0_87 = arith.constant 0 : index
      %c0_88 = arith.constant 0 : index
      %130 = vector.load %arg4[%c7_86, %c0_87, %c0_88] : memref<9x32x32xf32, #tpu.memory_space<vmem>>, vector<1x32x32xf32>
      %131 = vector.shape_cast %130 : vector<1x32x32xf32> to vector<32x32xf32>
      %cst_89 = arith.constant dense<0.000000e+00> : vector<32xf32>
      %132 = vector.multi_reduction <add>, %131, %cst_89 [1] : vector<32x32xf32> to vector<32xf32>
      %133 = vector.shape_cast %132 : vector<32xf32> to vector<32x1xf32>
      %cst_90 = arith.constant dense<0.000000e+00> : vector<1xf32>
      %134 = vector.multi_reduction <add>, %133, %cst_90 [0] : vector<32x1xf32> to vector<1xf32>
      %135 = vector.shape_cast %134 : vector<1xf32> to vector<1x1xf32>
      %136 = vector.shape_cast %135 : vector<1x1xf32> to vector<1x1xf32>
      %137 = vector.broadcast %136 : vector<1x1xf32> to vector<1x128xf32>
      %c8_91 = arith.constant 8 : index
      %c0_92 = arith.constant 0 : index
      %c0_93 = arith.constant 0 : index
      %138 = vector.load %arg4[%c8_91, %c0_92, %c0_93] : memref<9x32x32xf32, #tpu.memory_space<vmem>>, vector<1x32x32xf32>
      %139 = vector.shape_cast %138 : vector<1x32x32xf32> to vector<32x32xf32>
      %cst_94 = arith.constant dense<0.000000e+00> : vector<32xf32>
      %140 = vector.multi_reduction <add>, %139, %cst_94 [1] : vector<32x32xf32> to vector<32xf32>
      %141 = vector.shape_cast %140 : vector<32xf32> to vector<32x1xf32>
      %cst_95 = arith.constant dense<0.000000e+00> : vector<1xf32>
      %142 = vector.multi_reduction <add>, %141, %cst_95 [0] : vector<32x1xf32> to vector<1xf32>
      %143 = vector.shape_cast %142 : vector<1xf32> to vector<1x1xf32>
      %144 = vector.shape_cast %143 : vector<1x1xf32> to vector<1x1xf32>
      %145 = vector.broadcast %144 : vector<1x1xf32> to vector<1x128xf32>
      %146 = tpu.concatenate %81, %89, %97, %105, %113, %121, %129, %137, %145 in 0 : vector<1x128xf32>, vector<1x128xf32>, vector<1x128xf32>, vector<1x128xf32>, vector<1x128xf32>, vector<1x128xf32>, vector<1x128xf32>, vector<1x128xf32>, vector<1x128xf32> -> vector<9x128xf32>
      %c0_96 = arith.constant 0 : index
      %c0_97 = arith.constant 0 : index
      %c0_98 = arith.constant 0 : index
      %147 = vector.load %arg3[%c0_96, %c0_97, %c0_98] : memref<1x9x128xf32, #tpu.memory_space<vmem>>, vector<1x9x128xf32>
      %148 = vector.shape_cast %147 : vector<1x9x128xf32> to vector<9x128xf32>
      %149 = vector.shape_cast %146 : vector<9x128xf32> to vector<1x9x128xf32>
      tpu.vector_store %arg3[%c0_96, %c0_97, %c0_98], %149 {strides = array<i32>} : memref<1x9x128xf32, #tpu.memory_space<vmem>>, vector<1x9x128xf32>,
    } else {
    }
    return
  }
  func.func @transform_0(%arg0: i32, %arg1: i32) -> (i32, i32, i32, i32) {
    %c0_i32 = arith.constant 0 : i32
    %c0_i32_0 = arith.constant 0 : i32
    %c0_i32_1 = arith.constant 0 : i32
    return %arg0, %c0_i32, %arg1, %c0_i32_0 : i32, i32, i32, i32
  }
  func.func @transform_1(%arg0: i32, %arg1: i32) -> (i32, i32, i32) {
    %c0_i32 = arith.constant 0 : i32
    %c0_i32_0 = arith.constant 0 : i32
    %c0_i32_1 = arith.constant 0 : i32
    return %arg0, %c0_i32, %c0_i32_0 : i32, i32, i32
  }
}

module attributes {stable_mosaic.version = 11 : i64} {
  func.func @affine_apply_kernel(%arg0: i32, %arg1: i32, %arg2: memref<8x3xf32, #tpu.memory_space<smem>>, %arg3: memref<8xf32, #tpu.memory_space<smem>>, %arg4: memref<1x3x32x32xf32, #tpu.memory_space<vmem>>, %arg5: memref<1x8x32x32xf32, #tpu.memory_space<vmem>>) attributes {dimension_semantics = [#tpu.dimension_semantics<parallel>, #tpu.dimension_semantics<parallel>], iteration_bounds = array<i64: 2, 1>, scalar_prefetch = 0 : i64, scratch_operands = 0 : i64, tpu.core_type = #tpu.core_type<tc>, window_params = [{transform_indices = @transform_0, window_bounds = array<i64: 8, 3>}, {transform_indices = @transform_1, window_bounds = array<i64: 8>}, {transform_indices = @transform_2, window_bounds = array<i64: 1, 3, 32, 32>}, {transform_indices = @transform_3, window_bounds = array<i64: 1, 8, 32, 32>}]} {
    %c0 = arith.constant 0 : index
    %c0_0 = arith.constant 0 : index
    %c0_1 = arith.constant 0 : index
    %c0_2 = arith.constant 0 : index
    %0 = vector.load %arg4[%c0, %c0_0, %c0_1, %c0_2] : memref<1x3x32x32xf32, #tpu.memory_space<vmem>>, vector<1x3x32x32xf32>
    %1 = vector.shape_cast %0 : vector<1x3x32x32xf32> to vector<3x32x32xf32>
    %2 = vector.extract_strided_slice %1 {offsets = [0, 0, 0], sizes = [1, 32, 32], strides = [1, 1, 1]} : vector<3x32x32xf32> to vector<1x32x32xf32>
    %3 = vector.shape_cast %2 : vector<1x32x32xf32> to vector<32x32xf32>
    %4 = vector.extract_strided_slice %1 {offsets = [1, 0, 0], sizes = [1, 32, 32], strides = [1, 1, 1]} : vector<3x32x32xf32> to vector<1x32x32xf32>
    %5 = vector.shape_cast %4 : vector<1x32x32xf32> to vector<32x32xf32>
    %6 = vector.extract_strided_slice %1 {offsets = [2, 0, 0], sizes = [1, 32, 32], strides = [1, 1, 1]} : vector<3x32x32xf32> to vector<1x32x32xf32>
    %7 = vector.shape_cast %6 : vector<1x32x32xf32> to vector<32x32xf32>
    %c0_3 = arith.constant 0 : index
    %c0_4 = arith.constant 0 : index
    %8 = memref.load %arg2[%c0_3, %c0_4] : memref<8x3xf32, #tpu.memory_space<smem>>
    %9 = vector.broadcast %8 : f32 to vector<32x32xf32>
    %10 = arith.mulf %9, %3 : vector<32x32xf32>
    %c0_5 = arith.constant 0 : index
    %c1 = arith.constant 1 : index
    %11 = memref.load %arg2[%c0_5, %c1] : memref<8x3xf32, #tpu.memory_space<smem>>
    %12 = vector.broadcast %11 : f32 to vector<32x32xf32>
    %13 = arith.mulf %12, %5 : vector<32x32xf32>
    %14 = arith.addf %10, %13 : vector<32x32xf32>
    %c0_6 = arith.constant 0 : index
    %c2 = arith.constant 2 : index
    %15 = memref.load %arg2[%c0_6, %c2] : memref<8x3xf32, #tpu.memory_space<smem>>
    %16 = vector.broadcast %15 : f32 to vector<32x32xf32>
    %17 = arith.mulf %16, %7 : vector<32x32xf32>
    %18 = arith.addf %14, %17 : vector<32x32xf32>
    %c0_7 = arith.constant 0 : index
    %19 = memref.load %arg3[%c0_7] : memref<8xf32, #tpu.memory_space<smem>>
    %20 = vector.broadcast %19 : f32 to vector<32x32xf32>
    %21 = arith.addf %18, %20 : vector<32x32xf32>
    %c0_8 = arith.constant 0 : index
    %c0_9 = arith.constant 0 : index
    %c0_10 = arith.constant 0 : index
    %c0_11 = arith.constant 0 : index
    %22 = vector.load %arg5[%c0_8, %c0_9, %c0_10, %c0_11] : memref<1x8x32x32xf32, #tpu.memory_space<vmem>>, vector<1x1x32x32xf32>
    %23 = vector.shape_cast %22 : vector<1x1x32x32xf32> to vector<32x32xf32>
    %24 = vector.shape_cast %21 : vector<32x32xf32> to vector<1x1x32x32xf32>
    tpu.vector_store %arg5[%c0_8, %c0_9, %c0_10, %c0_11], %24 {strides = array<i32>} : memref<1x8x32x32xf32, #tpu.memory_space<vmem>>, vector<1x1x32x32xf32>,
    %c1_12 = arith.constant 1 : index
    %c0_13 = arith.constant 0 : index
    %25 = memref.load %arg2[%c1_12, %c0_13] : memref<8x3xf32, #tpu.memory_space<smem>>
    %26 = vector.broadcast %25 : f32 to vector<32x32xf32>
    %27 = arith.mulf %26, %3 : vector<32x32xf32>
    %c1_14 = arith.constant 1 : index
    %c1_15 = arith.constant 1 : index
    %28 = memref.load %arg2[%c1_14, %c1_15] : memref<8x3xf32, #tpu.memory_space<smem>>
    %29 = vector.broadcast %28 : f32 to vector<32x32xf32>
    %30 = arith.mulf %29, %5 : vector<32x32xf32>
    %31 = arith.addf %27, %30 : vector<32x32xf32>
    %c1_16 = arith.constant 1 : index
    %c2_17 = arith.constant 2 : index
    %32 = memref.load %arg2[%c1_16, %c2_17] : memref<8x3xf32, #tpu.memory_space<smem>>
    %33 = vector.broadcast %32 : f32 to vector<32x32xf32>
    %34 = arith.mulf %33, %7 : vector<32x32xf32>
    %35 = arith.addf %31, %34 : vector<32x32xf32>
    %c1_18 = arith.constant 1 : index
    %36 = memref.load %arg3[%c1_18] : memref<8xf32, #tpu.memory_space<smem>>
    %37 = vector.broadcast %36 : f32 to vector<32x32xf32>
    %38 = arith.addf %35, %37 : vector<32x32xf32>
    %c0_19 = arith.constant 0 : index
    %c1_20 = arith.constant 1 : index
    %c0_21 = arith.constant 0 : index
    %c0_22 = arith.constant 0 : index
    %39 = vector.load %arg5[%c0_19, %c1_20, %c0_21, %c0_22] : memref<1x8x32x32xf32, #tpu.memory_space<vmem>>, vector<1x1x32x32xf32>
    %40 = vector.shape_cast %39 : vector<1x1x32x32xf32> to vector<32x32xf32>
    %41 = vector.shape_cast %38 : vector<32x32xf32> to vector<1x1x32x32xf32>
    tpu.vector_store %arg5[%c0_19, %c1_20, %c0_21, %c0_22], %41 {strides = array<i32>} : memref<1x8x32x32xf32, #tpu.memory_space<vmem>>, vector<1x1x32x32xf32>,
    %c2_23 = arith.constant 2 : index
    %c0_24 = arith.constant 0 : index
    %42 = memref.load %arg2[%c2_23, %c0_24] : memref<8x3xf32, #tpu.memory_space<smem>>
    %43 = vector.broadcast %42 : f32 to vector<32x32xf32>
    %44 = arith.mulf %43, %3 : vector<32x32xf32>
    %c2_25 = arith.constant 2 : index
    %c1_26 = arith.constant 1 : index
    %45 = memref.load %arg2[%c2_25, %c1_26] : memref<8x3xf32, #tpu.memory_space<smem>>
    %46 = vector.broadcast %45 : f32 to vector<32x32xf32>
    %47 = arith.mulf %46, %5 : vector<32x32xf32>
    %48 = arith.addf %44, %47 : vector<32x32xf32>
    %c2_27 = arith.constant 2 : index
    %c2_28 = arith.constant 2 : index
    %49 = memref.load %arg2[%c2_27, %c2_28] : memref<8x3xf32, #tpu.memory_space<smem>>
    %50 = vector.broadcast %49 : f32 to vector<32x32xf32>
    %51 = arith.mulf %50, %7 : vector<32x32xf32>
    %52 = arith.addf %48, %51 : vector<32x32xf32>
    %c2_29 = arith.constant 2 : index
    %53 = memref.load %arg3[%c2_29] : memref<8xf32, #tpu.memory_space<smem>>
    %54 = vector.broadcast %53 : f32 to vector<32x32xf32>
    %55 = arith.addf %52, %54 : vector<32x32xf32>
    %c0_30 = arith.constant 0 : index
    %c2_31 = arith.constant 2 : index
    %c0_32 = arith.constant 0 : index
    %c0_33 = arith.constant 0 : index
    %56 = vector.load %arg5[%c0_30, %c2_31, %c0_32, %c0_33] : memref<1x8x32x32xf32, #tpu.memory_space<vmem>>, vector<1x1x32x32xf32>
    %57 = vector.shape_cast %56 : vector<1x1x32x32xf32> to vector<32x32xf32>
    %58 = vector.shape_cast %55 : vector<32x32xf32> to vector<1x1x32x32xf32>
    tpu.vector_store %arg5[%c0_30, %c2_31, %c0_32, %c0_33], %58 {strides = array<i32>} : memref<1x8x32x32xf32, #tpu.memory_space<vmem>>, vector<1x1x32x32xf32>,
    %c3 = arith.constant 3 : index
    %c0_34 = arith.constant 0 : index
    %59 = memref.load %arg2[%c3, %c0_34] : memref<8x3xf32, #tpu.memory_space<smem>>
    %60 = vector.broadcast %59 : f32 to vector<32x32xf32>
    %61 = arith.mulf %60, %3 : vector<32x32xf32>
    %c3_35 = arith.constant 3 : index
    %c1_36 = arith.constant 1 : index
    %62 = memref.load %arg2[%c3_35, %c1_36] : memref<8x3xf32, #tpu.memory_space<smem>>
    %63 = vector.broadcast %62 : f32 to vector<32x32xf32>
    %64 = arith.mulf %63, %5 : vector<32x32xf32>
    %65 = arith.addf %61, %64 : vector<32x32xf32>
    %c3_37 = arith.constant 3 : index
    %c2_38 = arith.constant 2 : index
    %66 = memref.load %arg2[%c3_37, %c2_38] : memref<8x3xf32, #tpu.memory_space<smem>>
    %67 = vector.broadcast %66 : f32 to vector<32x32xf32>
    %68 = arith.mulf %67, %7 : vector<32x32xf32>
    %69 = arith.addf %65, %68 : vector<32x32xf32>
    %c3_39 = arith.constant 3 : index
    %70 = memref.load %arg3[%c3_39] : memref<8xf32, #tpu.memory_space<smem>>
    %71 = vector.broadcast %70 : f32 to vector<32x32xf32>
    %72 = arith.addf %69, %71 : vector<32x32xf32>
    %c0_40 = arith.constant 0 : index
    %c3_41 = arith.constant 3 : index
    %c0_42 = arith.constant 0 : index
    %c0_43 = arith.constant 0 : index
    %73 = vector.load %arg5[%c0_40, %c3_41, %c0_42, %c0_43] : memref<1x8x32x32xf32, #tpu.memory_space<vmem>>, vector<1x1x32x32xf32>
    %74 = vector.shape_cast %73 : vector<1x1x32x32xf32> to vector<32x32xf32>
    %75 = vector.shape_cast %72 : vector<32x32xf32> to vector<1x1x32x32xf32>
    tpu.vector_store %arg5[%c0_40, %c3_41, %c0_42, %c0_43], %75 {strides = array<i32>} : memref<1x8x32x32xf32, #tpu.memory_space<vmem>>, vector<1x1x32x32xf32>,
    %c4 = arith.constant 4 : index
    %c0_44 = arith.constant 0 : index
    %76 = memref.load %arg2[%c4, %c0_44] : memref<8x3xf32, #tpu.memory_space<smem>>
    %77 = vector.broadcast %76 : f32 to vector<32x32xf32>
    %78 = arith.mulf %77, %3 : vector<32x32xf32>
    %c4_45 = arith.constant 4 : index
    %c1_46 = arith.constant 1 : index
    %79 = memref.load %arg2[%c4_45, %c1_46] : memref<8x3xf32, #tpu.memory_space<smem>>
    %80 = vector.broadcast %79 : f32 to vector<32x32xf32>
    %81 = arith.mulf %80, %5 : vector<32x32xf32>
    %82 = arith.addf %78, %81 : vector<32x32xf32>
    %c4_47 = arith.constant 4 : index
    %c2_48 = arith.constant 2 : index
    %83 = memref.load %arg2[%c4_47, %c2_48] : memref<8x3xf32, #tpu.memory_space<smem>>
    %84 = vector.broadcast %83 : f32 to vector<32x32xf32>
    %85 = arith.mulf %84, %7 : vector<32x32xf32>
    %86 = arith.addf %82, %85 : vector<32x32xf32>
    %c4_49 = arith.constant 4 : index
    %87 = memref.load %arg3[%c4_49] : memref<8xf32, #tpu.memory_space<smem>>
    %88 = vector.broadcast %87 : f32 to vector<32x32xf32>
    %89 = arith.addf %86, %88 : vector<32x32xf32>
    %c0_50 = arith.constant 0 : index
    %c4_51 = arith.constant 4 : index
    %c0_52 = arith.constant 0 : index
    %c0_53 = arith.constant 0 : index
    %90 = vector.load %arg5[%c0_50, %c4_51, %c0_52, %c0_53] : memref<1x8x32x32xf32, #tpu.memory_space<vmem>>, vector<1x1x32x32xf32>
    %91 = vector.shape_cast %90 : vector<1x1x32x32xf32> to vector<32x32xf32>
    %92 = vector.shape_cast %89 : vector<32x32xf32> to vector<1x1x32x32xf32>
    tpu.vector_store %arg5[%c0_50, %c4_51, %c0_52, %c0_53], %92 {strides = array<i32>} : memref<1x8x32x32xf32, #tpu.memory_space<vmem>>, vector<1x1x32x32xf32>,
    %c5 = arith.constant 5 : index
    %c0_54 = arith.constant 0 : index
    %93 = memref.load %arg2[%c5, %c0_54] : memref<8x3xf32, #tpu.memory_space<smem>>
    %94 = vector.broadcast %93 : f32 to vector<32x32xf32>
    %95 = arith.mulf %94, %3 : vector<32x32xf32>
    %c5_55 = arith.constant 5 : index
    %c1_56 = arith.constant 1 : index
    %96 = memref.load %arg2[%c5_55, %c1_56] : memref<8x3xf32, #tpu.memory_space<smem>>
    %97 = vector.broadcast %96 : f32 to vector<32x32xf32>
    %98 = arith.mulf %97, %5 : vector<32x32xf32>
    %99 = arith.addf %95, %98 : vector<32x32xf32>
    %c5_57 = arith.constant 5 : index
    %c2_58 = arith.constant 2 : index
    %100 = memref.load %arg2[%c5_57, %c2_58] : memref<8x3xf32, #tpu.memory_space<smem>>
    %101 = vector.broadcast %100 : f32 to vector<32x32xf32>
    %102 = arith.mulf %101, %7 : vector<32x32xf32>
    %103 = arith.addf %99, %102 : vector<32x32xf32>
    %c5_59 = arith.constant 5 : index
    %104 = memref.load %arg3[%c5_59] : memref<8xf32, #tpu.memory_space<smem>>
    %105 = vector.broadcast %104 : f32 to vector<32x32xf32>
    %106 = arith.addf %103, %105 : vector<32x32xf32>
    %c0_60 = arith.constant 0 : index
    %c5_61 = arith.constant 5 : index
    %c0_62 = arith.constant 0 : index
    %c0_63 = arith.constant 0 : index
    %107 = vector.load %arg5[%c0_60, %c5_61, %c0_62, %c0_63] : memref<1x8x32x32xf32, #tpu.memory_space<vmem>>, vector<1x1x32x32xf32>
    %108 = vector.shape_cast %107 : vector<1x1x32x32xf32> to vector<32x32xf32>
    %109 = vector.shape_cast %106 : vector<32x32xf32> to vector<1x1x32x32xf32>
    tpu.vector_store %arg5[%c0_60, %c5_61, %c0_62, %c0_63], %109 {strides = array<i32>} : memref<1x8x32x32xf32, #tpu.memory_space<vmem>>, vector<1x1x32x32xf32>,
    %c6 = arith.constant 6 : index
    %c0_64 = arith.constant 0 : index
    %110 = memref.load %arg2[%c6, %c0_64] : memref<8x3xf32, #tpu.memory_space<smem>>
    %111 = vector.broadcast %110 : f32 to vector<32x32xf32>
    %112 = arith.mulf %111, %3 : vector<32x32xf32>
    %c6_65 = arith.constant 6 : index
    %c1_66 = arith.constant 1 : index
    %113 = memref.load %arg2[%c6_65, %c1_66] : memref<8x3xf32, #tpu.memory_space<smem>>
    %114 = vector.broadcast %113 : f32 to vector<32x32xf32>
    %115 = arith.mulf %114, %5 : vector<32x32xf32>
    %116 = arith.addf %112, %115 : vector<32x32xf32>
    %c6_67 = arith.constant 6 : index
    %c2_68 = arith.constant 2 : index
    %117 = memref.load %arg2[%c6_67, %c2_68] : memref<8x3xf32, #tpu.memory_space<smem>>
    %118 = vector.broadcast %117 : f32 to vector<32x32xf32>
    %119 = arith.mulf %118, %7 : vector<32x32xf32>
    %120 = arith.addf %116, %119 : vector<32x32xf32>
    %c6_69 = arith.constant 6 : index
    %121 = memref.load %arg3[%c6_69] : memref<8xf32, #tpu.memory_space<smem>>
    %122 = vector.broadcast %121 : f32 to vector<32x32xf32>
    %123 = arith.addf %120, %122 : vector<32x32xf32>
    %c0_70 = arith.constant 0 : index
    %c6_71 = arith.constant 6 : index
    %c0_72 = arith.constant 0 : index
    %c0_73 = arith.constant 0 : index
    %124 = vector.load %arg5[%c0_70, %c6_71, %c0_72, %c0_73] : memref<1x8x32x32xf32, #tpu.memory_space<vmem>>, vector<1x1x32x32xf32>
    %125 = vector.shape_cast %124 : vector<1x1x32x32xf32> to vector<32x32xf32>
    %126 = vector.shape_cast %123 : vector<32x32xf32> to vector<1x1x32x32xf32>
    tpu.vector_store %arg5[%c0_70, %c6_71, %c0_72, %c0_73], %126 {strides = array<i32>} : memref<1x8x32x32xf32, #tpu.memory_space<vmem>>, vector<1x1x32x32xf32>,
    %c7 = arith.constant 7 : index
    %c0_74 = arith.constant 0 : index
    %127 = memref.load %arg2[%c7, %c0_74] : memref<8x3xf32, #tpu.memory_space<smem>>
    %128 = vector.broadcast %127 : f32 to vector<32x32xf32>
    %129 = arith.mulf %128, %3 : vector<32x32xf32>
    %c7_75 = arith.constant 7 : index
    %c1_76 = arith.constant 1 : index
    %130 = memref.load %arg2[%c7_75, %c1_76] : memref<8x3xf32, #tpu.memory_space<smem>>
    %131 = vector.broadcast %130 : f32 to vector<32x32xf32>
    %132 = arith.mulf %131, %5 : vector<32x32xf32>
    %133 = arith.addf %129, %132 : vector<32x32xf32>
    %c7_77 = arith.constant 7 : index
    %c2_78 = arith.constant 2 : index
    %134 = memref.load %arg2[%c7_77, %c2_78] : memref<8x3xf32, #tpu.memory_space<smem>>
    %135 = vector.broadcast %134 : f32 to vector<32x32xf32>
    %136 = arith.mulf %135, %7 : vector<32x32xf32>
    %137 = arith.addf %133, %136 : vector<32x32xf32>
    %c7_79 = arith.constant 7 : index
    %138 = memref.load %arg3[%c7_79] : memref<8xf32, #tpu.memory_space<smem>>
    %139 = vector.broadcast %138 : f32 to vector<32x32xf32>
    %140 = arith.addf %137, %139 : vector<32x32xf32>
    %c0_80 = arith.constant 0 : index
    %c7_81 = arith.constant 7 : index
    %c0_82 = arith.constant 0 : index
    %c0_83 = arith.constant 0 : index
    %141 = vector.load %arg5[%c0_80, %c7_81, %c0_82, %c0_83] : memref<1x8x32x32xf32, #tpu.memory_space<vmem>>, vector<1x1x32x32xf32>
    %142 = vector.shape_cast %141 : vector<1x1x32x32xf32> to vector<32x32xf32>
    %143 = vector.shape_cast %140 : vector<32x32xf32> to vector<1x1x32x32xf32>
    tpu.vector_store %arg5[%c0_80, %c7_81, %c0_82, %c0_83], %143 {strides = array<i32>} : memref<1x8x32x32xf32, #tpu.memory_space<vmem>>, vector<1x1x32x32xf32>,
    return
  }
  func.func @transform_0(%arg0: i32, %arg1: i32) -> (i32, i32) {
    %c0_i32 = arith.constant 0 : i32
    %c0_i32_0 = arith.constant 0 : i32
    %c0_i32_1 = arith.constant 0 : i32
    return %c0_i32, %c0_i32_0 : i32, i32
  }
  func.func @transform_1(%arg0: i32, %arg1: i32) -> i32 {
    %c0_i32 = arith.constant 0 : i32
    %c0_i32_0 = arith.constant 0 : i32
    return %c0_i32 : i32
  }
  func.func @transform_2(%arg0: i32, %arg1: i32) -> (i32, i32, i32, i32) {
    %c0_i32 = arith.constant 0 : i32
    %c0_i32_0 = arith.constant 0 : i32
    %c0_i32_1 = arith.constant 0 : i32
    return %arg0, %c0_i32, %arg1, %c0_i32_0 : i32, i32, i32, i32
  }
  func.func @transform_3(%arg0: i32, %arg1: i32) -> (i32, i32, i32, i32) {
    %c0_i32 = arith.constant 0 : i32
    %c0_i32_0 = arith.constant 0 : i32
    %c0_i32_1 = arith.constant 0 : i32
    return %arg0, %c0_i32, %arg1, %c0_i32_0 : i32, i32, i32, i32
  }
}

</mosaic_0001>

<llo_original>
// kernel: resblock_forward.2
$region0: #{resblock_forward.2}
  #allocation0 [shape = 'u32[]', space=smem, size = 0x4, offset = 0x4, fixed_abs, tag = 'smem constant byte address 0x4 - core index']
  #allocation1 [shape = 'u32[72,128]{1,0:T(1,128)}', space=vmem, size = 0x9000, scoped, tag = 'internal scratch']
  #allocation2 [shape = 'f32[9,32,32]{2,1,0:T(8,128)}', space=vmem, size = 0x24000, scoped, tag = 'scratch operand']
  %s0 = inlined_call_operand.hbm [shape: f32[2,3,32,32], index: 0, kind: input, shape index: {}]
  %s1 = inlined_call_operand.vmem [shape: f32[2,9,128], index: 1, kind: output, shape index: {}]
  %s2 = sld [smem:[#allocation0]]
  $region49: #{resblock_forward.2} parent=0
    _
  %s4 = ssub.s32 1, %s2
  %s5 = scalar_select 0, %s4, %s2
  $region1: #{resblock_forward.2} parent=0
    #allocation3 [shape = 'u8[98304]{0}', space=vmem, size = 0x18000, scoped, tag = 'input window, operand 0']
    #allocation4 [shape = 's32[2]{0}', space=sflag, size = 0x8, scoped, tag = 'scoped memory for resblock_forward.2']
    %6 = vsyncpa [#allocation4], 0
    %s7 = scalar_lea.sflag [#allocation4], 1
    %8 = vsyncpa %s7, 0
    loop: start=0, step=1, limit=4
    $region2: #{resblock_forward.2} parent=1 // loop_pre_header
      _
    $region3: #{resblock_forward.2} parent=1 // loop_header
      %s10 = sphi 0, %s14
      %p11 = scmp.ge.s32.totalorder %s10, 4
      %s17 = sphi 0, %s29
      %s18 = sphi 0, %s25
      %s19 = sphi 0, %s17
      %s20 = sphi 0, %s18
      %s21 = sphi 0, %s19
      %s22 = sphi 0, %s20
      %s34 = sphi 0, %s36
      %s37 = sphi 0, %s34
      %s38 = sphi 0, %s37
      %s54 = sphi 0, %s38
      %s60 = sphi 0, %s62
      %s63 = sphi 0, %s60
      %s64 = sphi 0, %s63
      %s80 = sphi 0, %s64
    $region4: #{resblock_forward.2} parent=1 // loop_header_branch
      %13 = sbr.rel (%p11) target = $region8
    $region5: #{resblock_forward.2} parent=1 // loop_body
      %s15 = ssub.s32 %s10, 1
      %s16 = ssub.s32 %s10, 2
      %s23 = sadd.s32 1, %s18
      %p24 = scmp.ge.s32.totalorder %s23, 1
      %s25 = scalar_select %p24, 0, %s23
      %s26 = sadd.s32 1, %s17
      %s27 = scalar_select %p24, %s26, %s17
      %p28 = scmp.ge.s32.totalorder %s27, 2
      %s29 = scalar_select %p28, 0, %s27
      %s30 = ssub.s32 %s17, %s29
      %s31 = ssub.s32 %s18, %s25
      %s32 = sor.u32 %s30, %s31
      %p33 = scmp.eq.s32.totalorder %s32, 0
      %s35 = sadd.s32 %s34, 1
      %s36 = scalar_select %p33, %s34, %s35
      %p39 = pneg %p33
      %p40 = scmp.eq.s32.totalorder %s10, 1
      %p41 = por %p39, %p40
      %p42 = scmp.ne.s32.totalorder %s34, %s37
      %p43 = scmp.eq.s32.totalorder %s10, 0
      %p44 = por %p42, %p43
      %p45 = scmp.ne.s32.totalorder %s34, %s37
      %p46 = scmp.eq.s32.totalorder %s15, 1
      %p47 = por %p45, %p46
      %p48 = scmp.ne.s32.totalorder %s37, %s38
      %p49 = scmp.eq.s32.totalorder %s15, 0
      %p50 = por %p48, %p49
      %p51 = scmp.ne.s32.totalorder %s37, %s38
      %p52 = scmp.eq.s32.totalorder %s16, 1
      %p53 = por %p51, %p52
      %p55 = scmp.ne.s32.totalorder %s38, %s54
      %p56 = scmp.eq.s32.totalorder %s16, 0
      %p57 = por %p55, %p56
      %s58 = ssub.s32 %s17, %s29
      %p59 = scmp.eq.s32.totalorder %s58, 0
      %s61 = sadd.s32 %s60, 1
      %s62 = scalar_select %p59, %s60, %s61
      %p65 = pneg %p59
      %p66 = scmp.eq.s32.totalorder %s10, 1
      %p67 = por %p65, %p66
      %p68 = scmp.ne.s32.totalorder %s60, %s63
      %p69 = scmp.eq.s32.totalorder %s10, 0
      %p70 = por %p68, %p69
      %p71 = scmp.ne.s32.totalorder %s60, %s63
      %p72 = scmp.eq.s32.totalorder %s15, 1
      %p73 = por %p71, %p72
      %p74 = scmp.ne.s32.totalorder %s63, %s64
      %p75 = scmp.eq.s32.totalorder %s15, 0
      %p76 = por %p74, %p75
      %p77 = scmp.ne.s32.totalorder %s63, %s64
      %p78 = scmp.eq.s32.totalorder %s16, 1
      %p79 = por %p77, %p78
      %p81 = scmp.ne.s32.totalorder %s64, %s80
      %p82 = scmp.eq.s32.totalorder %s16, 0
      %p83 = por %p81, %p82
      %p84 = scmp.le.s32.totalorder 1, %s10
      %p85 = scmp.lt.s32.totalorder %s10, 3
      %p86 = pnand %p84, %p85
      %p87 = pneg %p86
      // Predicated region
      $region9: #{resblock_forward.2} parent=5 // pred_check
        _
      $region10: #{resblock_forward.2} parent=5 // pred_check_branch
        %89 = sbr.rel (%p86) target = $region12
      $region11: #{resblock_forward.2} parent=5 // pred_region
        %s90 = ssub.s32 %s10, 1
      $region12: #{resblock_forward.2} parent=5 // pred_fallthru
        _
      %p91 = scmp.lt.s32.totalorder %s10, 2
      // Predicated region
      $region13: #{resblock_forward.2} parent=5 // pred_check
        %p92 = pneg %p91
      $region14: #{resblock_forward.2} parent=5 // pred_check_branch
        %94 = sbr.rel (%p92) target = $region16
      $region15: #{resblock_forward.2} parent=5 // pred_region
        // Predicated region
        $region17: #{resblock_forward.2} parent=15 // pred_check
          %p95 = pneg %p44
        $region18: #{resblock_forward.2} parent=15 // pred_check_branch
          %97 = sbr.rel (%p95) target = $region20
        $region19: #{resblock_forward.2} parent=15 // pred_region
          %s98 = sand.u32 %s34, 1
          %s99 = scalar_lea.sflag [#allocation4], %s98
          %s100 = sand.u32 %s34, 1
          %s101 = smul.addr %s100, 96
          %s102 = scalar_lea.vmem [#allocation3], %s101
          %s103 = smul.u32 4, %s18
          %105 = vsyncadd %s99, 0
          %s106 = smul.addr %s17, 12
          %s107 = sadd.s32 %s103, %s106
          %s108 = smul.addr %s107, 8
          %s109 = scalar_lea.hbm %s0, %s108
          %s110 = sshll.u32 %s109, 4
          %s111 = int_to_ptr.hbm [resolvable:$true] %s110
          %s112 = sshll.u32 %s102, 4
          %s113 = int_to_ptr.vmem [resolvable:$true] %s112
          %118 = dma.hbm_to_vmem [thread:$0]  %s111, 1536, %s113, %s99, 128, 128, 8
        $region20: #{resblock_forward.2} parent=15 // pred_fallthru
          _
      $region16: #{resblock_forward.2} parent=5 // pred_fallthru
        _
      %p119 = scmp.le.s32.totalorder 1, %s10
      %p120 = scmp.lt.s32.totalorder %s10, 3
      %p121 = pnand %p119, %p120
      %p122 = pneg %p121
      // Predicated region
      $region21: #{resblock_forward.2} parent=5 // pred_check
        _
      $region22: #{resblock_forward.2} parent=5 // pred_check_branch
        %124 = sbr.rel (%p121) target = $region24
      $region23: #{resblock_forward.2} parent=5 // pred_region
        %s125 = ssub.s32 %s10, 1
        %s126 = sand.u32 %s37, 1
        %s127 = scalar_lea.sflag [#allocation4], %s126
        %s128 = sand.u32 %s37, 1
        %s129 = smul.addr %s128, 96
        %s130 = scalar_lea.vmem [#allocation3], %s129
        // Predicated region
        $region25: #{resblock_forward.2} parent=23 // pred_check
          %p131 = pneg %p50
        $region26: #{resblock_forward.2} parent=23 // pred_check_branch
          %133 = sbr.rel (%p131) target = $region28
        $region27: #{resblock_forward.2} parent=23 // pred_region
          %135 = dma.done %s127, 1536
        $region28: #{resblock_forward.2} parent=23 // pred_fallthru
          _
        %s136 = sand.u32 %s37, 1
        %s137 = scalar_lea.sflag [#allocation4], %s136
        %s138 = sand.u32 %s37, 1
        %s139 = smul.addr %s138, 96
        %s140 = scalar_lea.vmem [#allocation3], %s139
        %p141 = pneg %p50
        %p142 = pneg %p47
        %p143 = pneg %p76
        %p144 = pneg %p73
        %p145 = scmp.lt.s32.totalorder %s19, 1
        %s146 = scalar_select %p145, %s19, 1
        %s147 = smul.addr %s146, 2
        %s148 = smul.addr %s147, 8
        %s149 = scalar_lea.vmem %s1, %s148
        %s150 = smul.u32 4, %s20
        %p151 = scmp.lt.s32.totalorder %s19, 1
        %s152 = scalar_select %p151, %s19, 1
        %s153 = smul.addr %s152, 2
        %s154 = smul.addr %s153, 8
        %s155 = scalar_lea.vmem %s1, %s154
        %p156 = scmp.eq.s32.totalorder %s20, 0
        // Predicated region
        $region29: #{resblock_forward.2} parent=23 // pred_check
          %p157 = pneg %p156
        $region30: #{resblock_forward.2} parent=23 // pred_check_branch
          %159 = sbr.rel (%p157) target = $region32
        $region31: #{resblock_forward.2} parent=23 // pred_region
          %vm160 = vcmask 261120
          %161 = vst.msk [vmem:[#allocation2] sm:$0xff] %vm160, 0.0
          %162 = vst.msk [vmem:[#allocation2 + $0x8] sm:$0xff] %vm160, 0.0
          %163 = vst.msk [vmem:[#allocation2 + $0x10] sm:$0xff] %vm160, 0.0
          %164 = vst.msk [vmem:[#allocation2 + $0x18] sm:$0xff] %vm160, 0.0
          %165 = vst.msk [vmem:[#allocation2 + $0x20] sm:$0xff] %vm160, 0.0
          %166 = vst.msk [vmem:[#allocation2 + $0x28] sm:$0xff] %vm160, 0.0
          %167 = vst.msk [vmem:[#allocation2 + $0x30] sm:$0xff] %vm160, 0.0
          %168 = vst.msk [vmem:[#allocation2 + $0x38] sm:$0xff] %vm160, 0.0
          %169 = vst.msk [vmem:[#allocation2 + $0x40] sm:$0xff] %vm160, 0.0
          %170 = vst.msk [vmem:[#allocation2 + $0x48] sm:$0xff] %vm160, 0.0
          %171 = vst.msk [vmem:[#allocation2 + $0x50] sm:$0xff] %vm160, 0.0
          %172 = vst.msk [vmem:[#allocation2 + $0x58] sm:$0xff] %vm160, 0.0
          %173 = vst.msk [vmem:[#allocation2 + $0x60] sm:$0xff] %vm160, 0.0
          %174 = vst.msk [vmem:[#allocation2 + $0x68] sm:$0xff] %vm160, 0.0
          %175 = vst.msk [vmem:[#allocation2 + $0x70] sm:$0xff] %vm160, 0.0
          %176 = vst.msk [vmem:[#allocation2 + $0x78] sm:$0xff] %vm160, 0.0
          %177 = vst.msk [vmem:[#allocation2 + $0x80] sm:$0xff] %vm160, 0.0
          %178 = vst.msk [vmem:[#allocation2 + $0x88] sm:$0xff] %vm160, 0.0
          %179 = vst.msk [vmem:[#allocation2 + $0x90] sm:$0xff] %vm160, 0.0
          %180 = vst.msk [vmem:[#allocation2 + $0x98] sm:$0xff] %vm160, 0.0
          %181 = vst.msk [vmem:[#allocation2 + $0xa0] sm:$0xff] %vm160, 0.0
          %182 = vst.msk [vmem:[#allocation2 + $0xa8] sm:$0xff] %vm160, 0.0
          %183 = vst.msk [vmem:[#allocation2 + $0xb0] sm:$0xff] %vm160, 0.0
          %184 = vst.msk [vmem:[#allocation2 + $0xb8] sm:$0xff] %vm160, 0.0
          %185 = vst.msk [vmem:[#allocation2 + $0xc0] sm:$0xff] %vm160, 0.0
          %186 = vst.msk [vmem:[#allocation2 + $0xc8] sm:$0xff] %vm160, 0.0
          %187 = vst.msk [vmem:[#allocation2 + $0xd0] sm:$0xff] %vm160, 0.0
          %188 = vst.msk [vmem:[#allocation2 + $0xd8] sm:$0xff] %vm160, 0.0
          %189 = vst.msk [vmem:[#allocation2 + $0xe0] sm:$0xff] %vm160, 0.0
          %190 = vst.msk [vmem:[#allocation2 + $0xe8] sm:$0xff] %vm160, 0.0
          %191 = vst.msk [vmem:[#allocation2 + $0xf0] sm:$0xff] %vm160, 0.0
          %192 = vst.msk [vmem:[#allocation2 + $0xf8] sm:$0xff] %vm160, 0.0
          %193 = vst.msk [vmem:[#allocation2 + $0x100] sm:$0xff] %vm160, 0.0
          %194 = vst.msk [vmem:[#allocation2 + $0x108] sm:$0xff] %vm160, 0.0
          %195 = vst.msk [vmem:[#allocation2 + $0x110] sm:$0xff] %vm160, 0.0
          %196 = vst.msk [vmem:[#allocation2 + $0x118] sm:$0xff] %vm160, 0.0
        $region32: #{resblock_forward.2} parent=23 // pred_fallthru
          _
        %v197 = vld [vmem:[%s130] sm:$0xff]
        %v198 = vld [vmem:[%s130 + $0x8] sm:$0xff]
        %v199 = vld [vmem:[%s130 + $0x10] sm:$0xff]
        %v200 = vld [vmem:[%s130 + $0x18] sm:$0xff]
        %v201 = vld [vmem:[%s130 + $0x20] sm:$0xff]
        %v202 = vld [vmem:[%s130 + $0x28] sm:$0xff]
        %v203 = vld [vmem:[%s130 + $0x30] sm:$0xff]
        %v204 = vld [vmem:[%s130 + $0x38] sm:$0xff]
        %v205 = vld [vmem:[%s130 + $0x40] sm:$0xff]
        %v206 = vld [vmem:[%s130 + $0x48] sm:$0xff]
        %v207 = vld [vmem:[%s130 + $0x50] sm:$0xff]
        %v208 = vld [vmem:[%s130 + $0x58] sm:$0xff]
        %v209 = vld [vmem:[#allocation2] sm:$0xff]
        %v210 = vld [vmem:[#allocation2 + $0x8] sm:$0xff]
        %v211 = vld [vmem:[#allocation2 + $0x10] sm:$0xff]
        %v212 = vld [vmem:[#allocation2 + $0x18] sm:$0xff]
        %v213 = vadd.f32 %v209, %v197
        %v214 = vadd.f32 %v210, %v198
        %v215 = vadd.f32 %v211, %v199
        %v216 = vadd.f32 %v212, %v200
        %vm217 = vcmask 261120
        %218 = vst.msk [vmem:[#allocation2] sm:$0xff] %vm217, %v213
        %219 = vst.msk [vmem:[#allocation2 + $0x8] sm:$0xff] %vm217, %v214
        %220 = vst.msk [vmem:[#allocation2 + $0x10] sm:$0xff] %vm217, %v215
        %221 = vst.msk [vmem:[#allocation2 + $0x18] sm:$0xff] %vm217, %v216
        %s222 = scalar_lea.vmem [#allocation2], 32
        %v223 = vld [vmem:[%s222] sm:$0xff]
        %v224 = vld [vmem:[%s222 + $0x8] sm:$0xff]
        %v225 = vld [vmem:[%s222 + $0x10] sm:$0xff]
        %v226 = vld [vmem:[%s222 + $0x18] sm:$0xff]
        %v227 = vadd.f32 %v223, %v201
        %v228 = vadd.f32 %v224, %v202
        %v229 = vadd.f32 %v225, %v203
        %v230 = vadd.f32 %v226, %v204
        %231 = vst.msk [vmem:[%s222] sm:$0xff] %vm217, %v227
        %232 = vst.msk [vmem:[%s222 + $0x8] sm:$0xff] %vm217, %v228
        %233 = vst.msk [vmem:[%s222 + $0x10] sm:$0xff] %vm217, %v229
        %234 = vst.msk [vmem:[%s222 + $0x18] sm:$0xff] %vm217, %v230
        %s235 = scalar_lea.vmem [#allocation2], 64
        %v236 = vld [vmem:[%s235] sm:$0xff]
        %v237 = vld [vmem:[%s235 + $0x8] sm:$0xff]
        %v238 = vld [vmem:[%s235 + $0x10] sm:$0xff]
        %v239 = vld [vmem:[%s235 + $0x18] sm:$0xff]
        %v240 = vadd.f32 %v236, %v205
        %v241 = vadd.f32 %v237, %v206
        %v242 = vadd.f32 %v238, %v207
        %v243 = vadd.f32 %v239, %v208
        %244 = vst.msk [vmem:[%s235] sm:$0xff] %vm217, %v240
        %245 = vst.msk [vmem:[%s235 + $0x8] sm:$0xff] %vm217, %v241
        %246 = vst.msk [vmem:[%s235 + $0x10] sm:$0xff] %vm217, %v242
        %247 = vst.msk [vmem:[%s235 + $0x18] sm:$0xff] %vm217, %v243
        %s248 = scalar_lea.vmem [#allocation2], 96
        %v249 = vld [vmem:[%s248] sm:$0xff]
        %v250 = vld [vmem:[%s248 + $0x8] sm:$0xff]
        %v251 = vld [vmem:[%s248 + $0x10] sm:$0xff]
        %v252 = vld [vmem:[%s248 + $0x18] sm:$0xff]
        %v253 = vmul.f32 %v197, %v197
        %v254 = vmul.f32 %v198, %v198
        %v255 = vmul.f32 %v199, %v199
        %v256 = vmul.f32 %v200, %v200
        %v257 = vadd.f32 %v249, %v253
        %v258 = vadd.f32 %v250, %v254
        %v259 = vadd.f32 %v251, %v255
        %v260 = vadd.f32 %v252, %v256
        %261 = vst.msk [vmem:[%s248] sm:$0xff] %vm217, %v257
        %262 = vst.msk [vmem:[%s248 + $0x8] sm:$0xff] %vm217, %v258
        %263 = vst.msk [vmem:[%s248 + $0x10] sm:$0xff] %vm217, %v259
        %264 = vst.msk [vmem:[%s248 + $0x18] sm:$0xff] %vm217, %v260
        %s265 = scalar_lea.vmem [#allocation2], 128
        %v266 = vld [vmem:[%s265] sm:$0xff]
        %v267 = vld [vmem:[%s265 + $0x8] sm:$0xff]
        %v268 = vld [vmem:[%s265 + $0x10] sm:$0xff]
        %v269 = vld [vmem:[%s265 + $0x18] sm:$0xff]
        %v270 = vmul.f32 %v197, %v201
        %v271 = vmul.f32 %v198, %v202
        %v272 = vmul.f32 %v199, %v203
        %v273 = vmul.f32 %v200, %v204
        %v274 = vadd.f32 %v266, %v270
        %v275 = vadd.f32 %v267, %v271
        %v276 = vadd.f32 %v268, %v272
        %v277 = vadd.f32 %v269, %v273
        %278 = vst.msk [vmem:[%s265] sm:$0xff] %vm217, %v274
        %279 = vst.msk [vmem:[%s265 + $0x8] sm:$0xff] %vm217, %v275
        %280 = vst.msk [vmem:[%s265 + $0x10] sm:$0xff] %vm217, %v276
        %281 = vst.msk [vmem:[%s265 + $0x18] sm:$0xff] %vm217, %v277
        %s282 = scalar_lea.vmem [#allocation2], 160
        %v283 = vld [vmem:[%s282] sm:$0xff]
        %v284 = vld [vmem:[%s282 + $0x8] sm:$0xff]
        %v285 = vld [vmem:[%s282 + $0x10] sm:$0xff]
        %v286 = vld [vmem:[%s282 + $0x18] sm:$0xff]
        %v287 = vmul.f32 %v197, %v205
        %v288 = vmul.f32 %v198, %v206
        %v289 = vmul.f32 %v199, %v207
        %v290 = vmul.f32 %v200, %v208
        %v291 = vadd.f32 %v283, %v287
        %v292 = vadd.f32 %v284, %v288
        %v293 = vadd.f32 %v285, %v289
        %v294 = vadd.f32 %v286, %v290
        %295 = vst.msk [vmem:[%s282] sm:$0xff] %vm217, %v291
        %296 = vst.msk [vmem:[%s282 + $0x8] sm:$0xff] %vm217, %v292
        %297 = vst.msk [vmem:[%s282 + $0x10] sm:$0xff] %vm217, %v293
        %298 = vst.msk [vmem:[%s282 + $0x18] sm:$0xff] %vm217, %v294
        %s299 = scalar_lea.vmem [#allocation2], 192
        %v300 = vld [vmem:[%s299] sm:$0xff]
        %v301 = vld [vmem:[%s299 + $0x8] sm:$0xff]
        %v302 = vld [vmem:[%s299 + $0x10] sm:$0xff]
        %v303 = vld [vmem:[%s299 + $0x18] sm:$0xff]
        %v304 = vmul.f32 %v201, %v201
        %v305 = vmul.f32 %v202, %v202
        %v306 = vmul.f32 %v203, %v203
        %v307 = vmul.f32 %v204, %v204
        %v308 = vadd.f32 %v300, %v304
        %v309 = vadd.f32 %v301, %v305
        %v310 = vadd.f32 %v302, %v306
        %v311 = vadd.f32 %v303, %v307
        %312 = vst.msk [vmem:[%s299] sm:$0xff] %vm217, %v308
        %313 = vst.msk [vmem:[%s299 + $0x8] sm:$0xff] %vm217, %v309
        %314 = vst.msk [vmem:[%s299 + $0x10] sm:$0xff] %vm217, %v310
        %315 = vst.msk [vmem:[%s299 + $0x18] sm:$0xff] %vm217, %v311
        %s316 = scalar_lea.vmem [#allocation2], 224
        %v317 = vld [vmem:[%s316] sm:$0xff]
        %v318 = vld [vmem:[%s316 + $0x8] sm:$0xff]
        %v319 = vld [vmem:[%s316 + $0x10] sm:$0xff]
        %v320 = vld [vmem:[%s316 + $0x18] sm:$0xff]
        %v321 = vmul.f32 %v201, %v205
        %v322 = vmul.f32 %v202, %v206
        %v323 = vmul.f32 %v203, %v207
        %v324 = vmul.f32 %v204, %v208
        %v325 = vadd.f32 %v317, %v321
        %v326 = vadd.f32 %v318, %v322
        %v327 = vadd.f32 %v319, %v323
        %v328 = vadd.f32 %v320, %v324
        %329 = vst.msk [vmem:[%s316] sm:$0xff] %vm217, %v325
        %330 = vst.msk [vmem:[%s316 + $0x8] sm:$0xff] %vm217, %v326
        %331 = vst.msk [vmem:[%s316 + $0x10] sm:$0xff] %vm217, %v327
        %332 = vst.msk [vmem:[%s316 + $0x18] sm:$0xff] %vm217, %v328
        %s333 = scalar_lea.vmem [#allocation2], 256
        %v334 = vld [vmem:[%s333] sm:$0xff]
        %v335 = vld [vmem:[%s333 + $0x8] sm:$0xff]
        %v336 = vld [vmem:[%s333 + $0x10] sm:$0xff]
        %v337 = vld [vmem:[%s333 + $0x18] sm:$0xff]
        %v338 = vmul.f32 %v205, %v205
        %v339 = vmul.f32 %v206, %v206
        %v340 = vmul.f32 %v207, %v207
        %v341 = vmul.f32 %v208, %v208
        %v342 = vadd.f32 %v334, %v338
        %v343 = vadd.f32 %v335, %v339
        %v344 = vadd.f32 %v336, %v340
        %v345 = vadd.f32 %v337, %v341
        %346 = vst.msk [vmem:[%s333] sm:$0xff] %vm217, %v342
        %347 = vst.msk [vmem:[%s333 + $0x8] sm:$0xff] %vm217, %v343
        %348 = vst.msk [vmem:[%s333 + $0x10] sm:$0xff] %vm217, %v344
        %349 = vst.msk [vmem:[%s333 + $0x18] sm:$0xff] %vm217, %v345
        // Predicated region
        $region33: #{resblock_forward.2} parent=23 // pred_check
          %p350 = pneg %p156
        $region34: #{resblock_forward.2} parent=23 // pred_check_branch
          %352 = sbr.rel (%p350) target = $region36
        $region35: #{resblock_forward.2} parent=23 // pred_region
          %v353 = vld [vmem:[#allocation2] sm:$0xff]
          %v354 = vld [vmem:[#allocation2 + $0x8] sm:$0xff]
          %v355 = vld [vmem:[#allocation2 + $0x10] sm:$0xff]
          %v356 = vld [vmem:[#allocation2 + $0x18] sm:$0xff]
          %v357 = vsel %vm217, %v353, 0.0
          %358 = vadd.xlane.f32.xlu0 %v357
          %v359 = vpop.xlane.xlu0 %358
          %v360 = vsel %vm217, %v354, 0.0
          %361 = vadd.xlane.f32.xlu0 %v360
          %v362 = vpop.xlane.xlu0 %361
          %v363 = vsel %vm217, %v355, 0.0
          %364 = vadd.xlane.f32.xlu0 %v363
          %v365 = vpop.xlane.xlu0 %364
          %v366 = vsel %vm217, %v356, 0.0
          %367 = vadd.xlane.f32.xlu0 %v366
          %v368 = vpop.xlane.xlu0 %367
          %v369 = vadd.f32 %v359, %v362
          %v370 = vadd.f32 %v369, %v365
          %v371 = vadd.f32 %v370, %v368
          %v372 = vrot.slane %v371, 4
          %v373 = vadd.f32 %v371, %v372
          %v374 = vrot.slane %v373, 2
          %v375 = vadd.f32 %v373, %v374
          %v376 = vrot.slane %v375, 1
          %v377 = vadd.f32 %v375, %v376
          %v378 = vld [vmem:[%s222] sm:$0xff]
          %v379 = vld [vmem:[%s222 + $0x8] sm:$0xff]
          %v380 = vld [vmem:[%s222 + $0x10] sm:$0xff]
          %v381 = vld [vmem:[%s222 + $0x18] sm:$0xff]
          %v382 = vsel %vm217, %v378, 0.0
          %383 = vadd.xlane.f32.xlu0 %v382
          %v384 = vpop.xlane.xlu0 %383
          %v385 = vsel %vm217, %v379, 0.0
          %386 = vadd.xlane.f32.xlu0 %v385
          %v387 = vpop.xlane.xlu0 %386
          %v388 = vsel %vm217, %v380, 0.0
          %389 = vadd.xlane.f32.xlu0 %v388
          %v390 = vpop.xlane.xlu0 %389
          %v391 = vsel %vm217, %v381, 0.0
          %392 = vadd.xlane.f32.xlu0 %v391
          %v393 = vpop.xlane.xlu0 %392
          %v394 = vadd.f32 %v384, %v387
          %v395 = vadd.f32 %v394, %v390
          %v396 = vadd.f32 %v395, %v393
          %v397 = vrot.slane %v396, 4
          %v398 = vadd.f32 %v396, %v397
          %v399 = vrot.slane %v398, 2
          %v400 = vadd.f32 %v398, %v399
          %v401 = vrot.slane %v400, 1
          %v402 = vadd.f32 %v400, %v401
          %v403 = vld [vmem:[%s235] sm:$0xff]
          %v404 = vld [vmem:[%s235 + $0x8] sm:$0xff]
          %v405 = vld [vmem:[%s235 + $0x10] sm:$0xff]
          %v406 = vld [vmem:[%s235 + $0x18] sm:$0xff]
          %v407 = vsel %vm217, %v403, 0.0
          %408 = vadd.xlane.f32.xlu0 %v407
          %v409 = vpop.xlane.xlu0 %408
          %v410 = vsel %vm217, %v404, 0.0
          %411 = vadd.xlane.f32.xlu0 %v410
          %v412 = vpop.xlane.xlu0 %411
          %v413 = vsel %vm217, %v405, 0.0
          %414 = vadd.xlane.f32.xlu0 %v413
          %v415 = vpop.xlane.xlu0 %414
          %v416 = vsel %vm217, %v406, 0.0
          %417 = vadd.xlane.f32.xlu0 %v416
          %v418 = vpop.xlane.xlu0 %417
          %v419 = vadd.f32 %v409, %v412
          %v420 = vadd.f32 %v419, %v415
          %v421 = vadd.f32 %v420, %v418
          %v422 = vrot.slane %v421, 4
          %v423 = vadd.f32 %v421, %v422
          %v424 = vrot.slane %v423, 2
          %v425 = vadd.f32 %v423, %v424
          %v426 = vrot.slane %v425, 1
          %v427 = vadd.f32 %v425, %v426
          %v428 = vld [vmem:[%s248] sm:$0xff]
          %v429 = vld [vmem:[%s248 + $0x8] sm:$0xff]
          %v430 = vld [vmem:[%s248 + $0x10] sm:$0xff]
          %v431 = vld [vmem:[%s248 + $0x18] sm:$0xff]
          %v432 = vsel %vm217, %v428, 0.0
          %433 = vadd.xlane.f32.xlu0 %v432
          %v434 = vpop.xlane.xlu0 %433
          %v435 = vsel %vm217, %v429, 0.0
          %436 = vadd.xlane.f32.xlu0 %v435
          %v437 = vpop.xlane.xlu0 %436
          %v438 = vsel %vm217, %v430, 0.0
          %439 = vadd.xlane.f32.xlu0 %v438
          %v440 = vpop.xlane.xlu0 %439
          %v441 = vsel %vm217, %v431, 0.0
          %442 = vadd.xlane.f32.xlu0 %v441
          %v443 = vpop.xlane.xlu0 %442
          %v444 = vadd.f32 %v434, %v437
          %v445 = vadd.f32 %v444, %v440
          %v446 = vadd.f32 %v445, %v443
          %v447 = vrot.slane %v446, 4
          %v448 = vadd.f32 %v446, %v447
          %v449 = vrot.slane %v448, 2
          %v450 = vadd.f32 %v448, %v449
          %v451 = vrot.slane %v450, 1
          %v452 = vadd.f32 %v450, %v451
          %v453 = vld [vmem:[%s265] sm:$0xff]
          %v454 = vld [vmem:[%s265 + $0x8] sm:$0xff]
          %v455 = vld [vmem:[%s265 + $0x10] sm:$0xff]
          %v456 = vld [vmem:[%s265 + $0x18] sm:$0xff]
          %v457 = vsel %vm217, %v453, 0.0
          %458 = vadd.xlane.f32.xlu0 %v457
          %v459 = vpop.xlane.xlu0 %458
          %v460 = vsel %vm217, %v454, 0.0
          %461 = vadd.xlane.f32.xlu0 %v460
          %v462 = vpop.xlane.xlu0 %461
          %v463 = vsel %vm217, %v455, 0.0
          %464 = vadd.xlane.f32.xlu0 %v463
          %v465 = vpop.xlane.xlu0 %464
          %v466 = vsel %vm217, %v456, 0.0
          %467 = vadd.xlane.f32.xlu0 %v466
          %v468 = vpop.xlane.xlu0 %467
          %v469 = vadd.f32 %v459, %v462
          %v470 = vadd.f32 %v469, %v465
          %v471 = vadd.f32 %v470, %v468
          %v472 = vrot.slane %v471, 4
          %v473 = vadd.f32 %v471, %v472
          %v474 = vrot.slane %v473, 2
          %v475 = vadd.f32 %v473, %v474
          %v476 = vrot.slane %v475, 1
          %v477 = vadd.f32 %v475, %v476
          %v478 = vld [vmem:[%s282] sm:$0xff]
          %v479 = vld [vmem:[%s282 + $0x8] sm:$0xff]
          %v480 = vld [vmem:[%s282 + $0x10] sm:$0xff]
          %v481 = vld [vmem:[%s282 + $0x18] sm:$0xff]
          %v482 = vsel %vm217, %v478, 0.0
          %483 = vadd.xlane.f32.xlu0 %v482
          %v484 = vpop.xlane.xlu0 %483
          %v485 = vsel %vm217, %v479, 0.0
          %486 = vadd.xlane.f32.xlu0 %v485
          %v487 = vpop.xlane.xlu0 %486
          %v488 = vsel %vm217, %v480, 0.0
          %489 = vadd.xlane.f32.xlu0 %v488
          %v490 = vpop.xlane.xlu0 %489
          %v491 = vsel %vm217, %v481, 0.0
          %492 = vadd.xlane.f32.xlu0 %v491
          %v493 = vpop.xlane.xlu0 %492
          %v494 = vadd.f32 %v484, %v487
          %v495 = vadd.f32 %v494, %v490
          %v496 = vadd.f32 %v495, %v493
          %v497 = vrot.slane %v496, 4
          %v498 = vadd.f32 %v496, %v497
          %v499 = vrot.slane %v498, 2
          %v500 = vadd.f32 %v498, %v499
          %v501 = vrot.slane %v500, 1
          %v502 = vadd.f32 %v500, %v501
          %v503 = vld [vmem:[%s299] sm:$0xff]
          %v504 = vld [vmem:[%s299 + $0x8] sm:$0xff]
          %v505 = vld [vmem:[%s299 + $0x10] sm:$0xff]
          %v506 = vld [vmem:[%s299 + $0x18] sm:$0xff]
          %v507 = vsel %vm217, %v503, 0.0
          %508 = vadd.xlane.f32.xlu0 %v507
          %v509 = vpop.xlane.xlu0 %508
          %v510 = vsel %vm217, %v504, 0.0
          %511 = vadd.xlane.f32.xlu0 %v510
          %v512 = vpop.xlane.xlu0 %511
          %v513 = vsel %vm217, %v505, 0.0
          %514 = vadd.xlane.f32.xlu0 %v513
          %v515 = vpop.xlane.xlu0 %514
          %v516 = vsel %vm217, %v506, 0.0
          %517 = vadd.xlane.f32.xlu0 %v516
          %v518 = vpop.xlane.xlu0 %517
          %v519 = vadd.f32 %v509, %v512
          %v520 = vadd.f32 %v519, %v515
          %v521 = vadd.f32 %v520, %v518
          %v522 = vrot.slane %v521, 4
          %v523 = vadd.f32 %v521, %v522
          %v524 = vrot.slane %v523, 2
          %v525 = vadd.f32 %v523, %v524
          %v526 = vrot.slane %v525, 1
          %v527 = vadd.f32 %v525, %v526
          %v528 = vld [vmem:[%s316] sm:$0xff]
          %v529 = vld [vmem:[%s316 + $0x8] sm:$0xff]
          %v530 = vld [vmem:[%s316 + $0x10] sm:$0xff]
          %v531 = vld [vmem:[%s316 + $0x18] sm:$0xff]
          %v532 = vsel %vm217, %v528, 0.0
          %533 = vadd.xlane.f32.xlu0 %v532
          %v534 = vpop.xlane.xlu0 %533
          %v535 = vsel %vm217, %v529, 0.0
          %536 = vadd.xlane.f32.xlu0 %v535
          %v537 = vpop.xlane.xlu0 %536
          %v538 = vsel %vm217, %v530, 0.0
          %539 = vadd.xlane.f32.xlu0 %v538
          %v540 = vpop.xlane.xlu0 %539
          %v541 = vsel %vm217, %v531, 0.0
          %542 = vadd.xlane.f32.xlu0 %v541
          %v543 = vpop.xlane.xlu0 %542
          %v544 = vadd.f32 %v534, %v537
          %v545 = vadd.f32 %v544, %v540
          %v546 = vadd.f32 %v545, %v543
          %v547 = vrot.slane %v546, 4
          %v548 = vadd.f32 %v546, %v547
          %v549 = vrot.slane %v548, 2
          %v550 = vadd.f32 %v548, %v549
          %v551 = vrot.slane %v550, 1
          %v552 = vadd.f32 %v550, %v551
          %v553 = vld [vmem:[%s333] sm:$0xff]
          %v554 = vld [vmem:[%s333 + $0x8] sm:$0xff]
          %v555 = vld [vmem:[%s333 + $0x10] sm:$0xff]
          %v556 = vld [vmem:[%s333 + $0x18] sm:$0xff]
          %v557 = vsel %vm217, %v553, 0.0
          %558 = vadd.xlane.f32.xlu0 %v557
          %v559 = vpop.xlane.xlu0 %558
          %v560 = vsel %vm217, %v554, 0.0
          %561 = vadd.xlane.f32.xlu0 %v560
          %v562 = vpop.xlane.xlu0 %561
          %v563 = vsel %vm217, %v555, 0.0
          %564 = vadd.xlane.f32.xlu0 %v563
          %v565 = vpop.xlane.xlu0 %564
          %v566 = vsel %vm217, %v556, 0.0
          %567 = vadd.xlane.f32.xlu0 %v566
          %v568 = vpop.xlane.xlu0 %567
          %v569 = vadd.f32 %v559, %v562
          %v570 = vadd.f32 %v569, %v565
          %v571 = vadd.f32 %v570, %v568
          %v572 = vrot.slane %v571, 4
          %v573 = vadd.f32 %v571, %v572
          %v574 = vrot.slane %v573, 2
          %v575 = vadd.f32 %v573, %v574
          %v576 = vrot.slane %v575, 1
          %v577 = vadd.f32 %v575, %v576
          %vm578 = vcmask 1040384
          %v579 = vsel %vm578, %v377, %v402
          %vm580 = vcmask 1041408
          %v581 = vsel %vm580, %v579, %v427
          %vm582 = vcmask 1042432
          %v583 = vsel %vm582, %v581, %v452
          %vm584 = vcmask 1043456
          %v585 = vsel %vm584, %v583, %v477
          %vm586 = vcmask 1044480
          %v587 = vsel %vm586, %v585, %v502
          %vm588 = vcmask 1045504
          %v589 = vsel %vm588, %v587, %v527
          %vm590 = vcmask 1046528
          %v591 = vsel %vm590, %v589, %v552
          %592 = vst [vmem:[%s155] sm:$0xff] %v591
          %593 = vst [vmem:[%s155 + $0x8] sm:$0x1] %v577
        $region36: #{resblock_forward.2} parent=23 // pred_fallthru
          _
        %p594 = scmp.lt.s32.totalorder %s19, 1
        %s595 = scalar_select %p594, %s19, 1
        %s596 = smul.addr %s595, 2
        %s597 = smul.addr %s596, 8
        %s598 = scalar_lea.vmem %s1, %s597
        // Predicated region
        $region37: #{resblock_forward.2} parent=23 // pred_check
          %p599 = pneg %p73
        $region38: #{resblock_forward.2} parent=23 // pred_check_branch
          %601 = sbr.rel (%p599) target = $region40
        $region39: #{resblock_forward.2} parent=23 // pred_region
          _
        $region40: #{resblock_forward.2} parent=23 // pred_fallthru
          _
      $region24: #{resblock_forward.2} parent=5 // pred_fallthru
        _
      %p602 = scmp.le.s32.totalorder 2, %s10
      // Predicated region
      $region41: #{resblock_forward.2} parent=5 // pred_check
        %p603 = pneg %p602
      $region42: #{resblock_forward.2} parent=5 // pred_check_branch
        %605 = sbr.rel (%p603) target = $region44
      $region43: #{resblock_forward.2} parent=5 // pred_region
        %s606 = ssub.s32 %s10, 2
        // Predicated region
        $region45: #{resblock_forward.2} parent=43 // pred_check
          %p607 = pneg %p79
        $region46: #{resblock_forward.2} parent=43 // pred_check_branch
          %609 = sbr.rel (%p607) target = $region48
        $region47: #{resblock_forward.2} parent=43 // pred_region
          %p610 = scmp.lt.s32.totalorder %s21, 1
          %s611 = scalar_select %p610, %s21, 1
          %s612 = smul.addr %s611, 2
          %s613 = smul.addr %s612, 8
          %s614 = scalar_lea.vmem %s1, %s613
        $region48: #{resblock_forward.2} parent=43 // pred_fallthru
          _
      $region44: #{resblock_forward.2} parent=5 // pred_fallthru
        _
    $region6: #{resblock_forward.2} parent=1 // loop_footer
      %s14 = sadd.s32 1, %s10
    $region7: #{resblock_forward.2} parent=1 // loop_footer_branch
      %9 = sbr.rel target = $region3
    $region8: #{resblock_forward.2} parent=1 // loop_exit
      _
    %615 = vsyncpa [#allocation4], 1
    %s616 = scalar_lea.sflag [#allocation4], 1
    %617 = vsyncpa %s616, 1

// kernel: resblock_forward.3
$region0: #{resblock_forward.3}
  #allocation0 [shape = 'u32[]', space=smem, size = 0x4, offset = 0x4, fixed_abs, tag = 'smem constant byte address 0x4 - core index']
  #allocation1 [shape = 'u32[72,128]{1,0:T(1,128)}', space=vmem, size = 0x9000, scoped, tag = 'internal scratch']
  %s0 = inlined_call_operand.vmem [shape: f32[8,3], index: 0, kind: input, shape index: {}]
  %s1 = inlined_call_operand.vmem [shape: f32[8], index: 1, kind: input, shape index: {}]
  %s2 = inlined_call_operand.hbm [shape: f32[2,3,32,32], index: 2, kind: input, shape index: {}]
  %s3 = inlined_call_operand.hbm [shape: f32[2,8,32,32], index: 3, kind: output, shape index: {}]
  %s4 = sld [smem:[#allocation0]]
  $region57: #{resblock_forward.3} parent=0
    _
  %s6 = ssub.s32 1, %s4
  %s7 = scalar_select 0, %s6, %s4
  $region1: #{resblock_forward.3} parent=0
    #allocation2 [shape = 'u8[4096]{0}', space=smem, size = 0x1000, scoped, tag = 'input window, operand 0, single buffered']
    #allocation3 [shape = 's32[2]{0}', space=sflag, size = 0x8, scoped, tag = 'scoped memory for resblock_forward.3']
    #allocation4 [shape = 's32[2]{0}', space=sflag, size = 0x8, scoped, tag = 'scoped memory for resblock_forward.3']
    #allocation5 [shape = 's32[2]{0}', space=sflag, size = 0x8, scoped, tag = 'scoped memory for resblock_forward.3']
    #allocation6 [shape = 'u8[512]{0}', space=smem, size = 0x200, scoped, tag = 'input window, operand 1, single buffered']
    #allocation7 [shape = 's32[1]{0}', space=sflag, size = 0x4, scoped, tag = 'scoped memory for resblock_forward.3']
    #allocation8 [shape = 'u8[98304]{0}', space=vmem, size = 0x18000, scoped, tag = 'input window, operand 2']
    #allocation9 [shape = 'u8[262144]{0}', space=vmem, size = 0x40000, scoped, tag = 'output window, operand 0']
    %8 = vsyncpa [#allocation5], 0
    %9 = vsyncpa [#allocation7], 0
    %10 = vsyncpa [#allocation3], 0
    %s11 = scalar_lea.sflag [#allocation3], 1
    %12 = vsyncpa %s11, 0
    %13 = vsyncpa [#allocation4], 0
    %s14 = scalar_lea.sflag [#allocation4], 1
    %15 = vsyncpa %s14, 0
    loop: start=0, step=1, limit=4
    $region2: #{resblock_forward.3} parent=1 // loop_pre_header
      _
    $region3: #{resblock_forward.3} parent=1 // loop_header
      %s17 = sphi 0, %s21
      %p18 = scmp.ge.s32.totalorder %s17, 4
      %s24 = sphi 0, %s36
      %s25 = sphi 0, %s32
      %s26 = sphi 0, %s24
      %s27 = sphi 0, %s25
      %s28 = sphi 0, %s26
      %s29 = sphi 0, %s27
      %s37 = sphi 0, %s37
      %s39 = sphi 0, %s37
      %s40 = sphi 0, %s39
      %s54 = sphi 0, %s40
      %s58 = sphi 0, %s58
      %s60 = sphi 0, %s58
      %s61 = sphi 0, %s60
      %s75 = sphi 0, %s61
      %s83 = sphi 0, %s85
      %s86 = sphi 0, %s83
      %s87 = sphi 0, %s86
      %s103 = sphi 0, %s87
      %s111 = sphi 0, %s113
      %s114 = sphi 0, %s111
      %s115 = sphi 0, %s114
      %s131 = sphi 0, %s115
    $region4: #{resblock_forward.3} parent=1 // loop_header_branch
      %20 = sbr.rel (%p18) target = $region8
    $region5: #{resblock_forward.3} parent=1 // loop_body
      %s22 = ssub.s32 %s17, 1
      %s23 = ssub.s32 %s17, 2
      %s30 = sadd.s32 1, %s25
      %p31 = scmp.ge.s32.totalorder %s30, 1
      %s32 = scalar_select %p31, 0, %s30
      %s33 = sadd.s32 1, %s24
      %s34 = scalar_select %p31, %s33, %s24
      %p35 = scmp.ge.s32.totalorder %s34, 2
      %s36 = scalar_select %p35, 0, %s34
      %s38 = sadd.s32 %s37, 1
      %p41 = scmp.eq.s32.totalorder %s17, 1
      %p42 = scmp.ne.s32.totalorder %s37, %s39
      %p43 = scmp.eq.s32.totalorder %s17, 0
      %p44 = por %p42, %p43
      %p45 = scmp.ne.s32.totalorder %s37, %s39
      %p46 = scmp.eq.s32.totalorder %s22, 1
      %p47 = por %p45, %p46
      %p48 = scmp.ne.s32.totalorder %s39, %s40
      %p49 = scmp.eq.s32.totalorder %s22, 0
      %p50 = por %p48, %p49
      %p51 = scmp.ne.s32.totalorder %s39, %s40
      %p52 = scmp.eq.s32.totalorder %s23, 1
      %p53 = por %p51, %p52
      %p55 = scmp.ne.s32.totalorder %s40, %s54
      %p56 = scmp.eq.s32.totalorder %s23, 0
      %p57 = por %p55, %p56
      %s59 = sadd.s32 %s58, 1
      %p62 = scmp.eq.s32.totalorder %s17, 1
      %p63 = scmp.ne.s32.totalorder %s58, %s60
      %p64 = scmp.eq.s32.totalorder %s17, 0
      %p65 = por %p63, %p64
      %p66 = scmp.ne.s32.totalorder %s58, %s60
      %p67 = scmp.eq.s32.totalorder %s22, 1
      %p68 = por %p66, %p67
      %p69 = scmp.ne.s32.totalorder %s60, %s61
      %p70 = scmp.eq.s32.totalorder %s22, 0
      %p71 = por %p69, %p70
      %p72 = scmp.ne.s32.totalorder %s60, %s61
      %p73 = scmp.eq.s32.totalorder %s23, 1
      %p74 = por %p72, %p73
      %p76 = scmp.ne.s32.totalorder %s61, %s75
      %p77 = scmp.eq.s32.totalorder %s23, 0
      %p78 = por %p76, %p77
      %s79 = ssub.s32 %s24, %s36
      %s80 = ssub.s32 %s25, %s32
      %s81 = sor.u32 %s79, %s80
      %p82 = scmp.eq.s32.totalorder %s81, 0
      %s84 = sadd.s32 %s83, 1
      %s85 = scalar_select %p82, %s83, %s84
      %p88 = pneg %p82
      %p89 = scmp.eq.s32.totalorder %s17, 1
      %p90 = por %p88, %p89
      %p91 = scmp.ne.s32.totalorder %s83, %s86
      %p92 = scmp.eq.s32.totalorder %s17, 0
      %p93 = por %p91, %p92
      %p94 = scmp.ne.s32.totalorder %s83, %s86
      %p95 = scmp.eq.s32.totalorder %s22, 1
      %p96 = por %p94, %p95
      %p97 = scmp.ne.s32.totalorder %s86, %s87
      %p98 = scmp.eq.s32.totalorder %s22, 0
      %p99 = por %p97, %p98
      %p100 = scmp.ne.s32.totalorder %s86, %s87
      %p101 = scmp.eq.s32.totalorder %s23, 1
      %p102 = por %p100, %p101
      %p104 = scmp.ne.s32.totalorder %s87, %s103
      %p105 = scmp.eq.s32.totalorder %s23, 0
      %p106 = por %p104, %p105
      %s107 = ssub.s32 %s24, %s36
      %s108 = ssub.s32 %s25, %s32
      %s109 = sor.u32 %s107, %s108
      %p110 = scmp.eq.s32.totalorder %s109, 0
      %s112 = sadd.s32 %s111, 1
      %s113 = scalar_select %p110, %s111, %s112
      %p116 = pneg %p110
      %p117 = scmp.eq.s32.totalorder %s17, 1
      %p118 = por %p116, %p117
      %p119 = scmp.ne.s32.totalorder %s111, %s114
      %p120 = scmp.eq.s32.totalorder %s17, 0
      %p121 = por %p119, %p120
      %p122 = scmp.ne.s32.totalorder %s111, %s114
      %p123 = scmp.eq.s32.totalorder %s22, 1
      %p124 = por %p122, %p123
      %p125 = scmp.ne.s32.totalorder %s114, %s115
      %p126 = scmp.eq.s32.totalorder %s22, 0
      %p127 = por %p125, %p126
      %p128 = scmp.ne.s32.totalorder %s114, %s115
      %p129 = scmp.eq.s32.totalorder %s23, 1
      %p130 = por %p128, %p129
      %p132 = scmp.ne.s32.totalorder %s115, %s131
      %p133 = scmp.eq.s32.totalorder %s23, 0
      %p134 = por %p132, %p133
      %p135 = scmp.le.s32.totalorder 1, %s17
      %p136 = scmp.lt.s32.totalorder %s17, 3
      %p137 = pnand %p135, %p136
      %p138 = pneg %p137
      // Predicated region
      $region9: #{resblock_forward.3} parent=5 // pred_check
        _
      $region10: #{resblock_forward.3} parent=5 // pred_check_branch
        %140 = sbr.rel (%p137) target = $region12
      $region11: #{resblock_forward.3} parent=5 // pred_region
        %s141 = ssub.s32 %s17, 1
        // Predicated region
        $region13: #{resblock_forward.3} parent=11 // pred_check
          %p142 = pneg %p50
        $region14: #{resblock_forward.3} parent=11 // pred_check_branch
          %144 = sbr.rel (%p142) target = $region16
        $region15: #{resblock_forward.3} parent=11 // pred_region
          %146 = vsyncadd [#allocation5], 0
          %s148 = sshll.u32 %s0, 4
          %s149 = int_to_ptr.vmem [resolvable:$true] %s148
          %151 = dma.vmem_to_smem %s149, 128, [#allocation2], [#allocation5]
        $region16: #{resblock_forward.3} parent=11 // pred_fallthru
          _
        // Predicated region
        $region17: #{resblock_forward.3} parent=11 // pred_check
          %p152 = pneg %p71
        $region18: #{resblock_forward.3} parent=11 // pred_check_branch
          %154 = sbr.rel (%p152) target = $region20
        $region19: #{resblock_forward.3} parent=11 // pred_region
          %156 = vsyncadd [#allocation7], 0
          %s158 = sshll.u32 %s1, 4
          %s159 = int_to_ptr.vmem [resolvable:$true] %s158
          %161 = dma.vmem_to_smem %s159, 16, [#allocation6], [#allocation7]
        $region20: #{resblock_forward.3} parent=11 // pred_fallthru
          _
      $region12: #{resblock_forward.3} parent=5 // pred_fallthru
        _
      %p162 = scmp.lt.s32.totalorder %s17, 2
      // Predicated region
      $region21: #{resblock_forward.3} parent=5 // pred_check
        %p163 = pneg %p162
      $region22: #{resblock_forward.3} parent=5 // pred_check_branch
        %165 = sbr.rel (%p163) target = $region24
      $region23: #{resblock_forward.3} parent=5 // pred_region
        // Predicated region
        $region25: #{resblock_forward.3} parent=23 // pred_check
          %p166 = pneg %p93
        $region26: #{resblock_forward.3} parent=23 // pred_check_branch
          %168 = sbr.rel (%p166) target = $region28
        $region27: #{resblock_forward.3} parent=23 // pred_region
          %s169 = sand.u32 %s83, 1
          %s170 = scalar_lea.sflag [#allocation3], %s169
          %s171 = sand.u32 %s83, 1
          %s172 = smul.addr %s171, 96
          %s173 = scalar_lea.vmem [#allocation8], %s172
          %s174 = smul.u32 4, %s25
          %176 = vsyncadd %s170, 0
          %s177 = smul.addr %s24, 12
          %s178 = sadd.s32 %s174, %s177
          %s179 = smul.addr %s178, 8
          %s180 = scalar_lea.hbm %s2, %s179
          %s181 = sshll.u32 %s180, 4
          %s182 = int_to_ptr.hbm [resolvable:$true] %s181
          %s183 = sshll.u32 %s173, 4
          %s184 = int_to_ptr.vmem [resolvable:$true] %s183
          %189 = dma.hbm_to_vmem [thread:$0]  %s182, 1536, %s184, %s170, 128, 128, 8
        $region28: #{resblock_forward.3} parent=23 // pred_fallthru
          _
      $region24: #{resblock_forward.3} parent=5 // pred_fallthru
        _
      %p190 = scmp.le.s32.totalorder 1, %s17
      %p191 = scmp.lt.s32.totalorder %s17, 3
      %p192 = pnand %p190, %p191
      %p193 = pneg %p192
      // Predicated region
      $region29: #{resblock_forward.3} parent=5 // pred_check
        _
      $region30: #{resblock_forward.3} parent=5 // pred_check_branch
        %195 = sbr.rel (%p192) target = $region32
      $region31: #{resblock_forward.3} parent=5 // pred_region
        %s196 = ssub.s32 %s17, 1
        // Predicated region
        $region33: #{resblock_forward.3} parent=31 // pred_check
          %p197 = pneg %p50
        $region34: #{resblock_forward.3} parent=31 // pred_check_branch
          %199 = sbr.rel (%p197) target = $region36
        $region35: #{resblock_forward.3} parent=31 // pred_region
          %201 = dma.done [#allocation5], 128
        $region36: #{resblock_forward.3} parent=31 // pred_fallthru
          _
        // Predicated region
        $region37: #{resblock_forward.3} parent=31 // pred_check
          %p202 = pneg %p71
        $region38: #{resblock_forward.3} parent=31 // pred_check_branch
          %204 = sbr.rel (%p202) target = $region40
        $region39: #{resblock_forward.3} parent=31 // pred_region
          %206 = dma.done [#allocation7], 16
        $region40: #{resblock_forward.3} parent=31 // pred_fallthru
          _
        %s207 = sand.u32 %s86, 1
        %s208 = scalar_lea.sflag [#allocation3], %s207
        %s209 = sand.u32 %s86, 1
        %s210 = smul.addr %s209, 96
        %s211 = scalar_lea.vmem [#allocation8], %s210
        // Predicated region
        $region41: #{resblock_forward.3} parent=31 // pred_check
          %p212 = pneg %p99
        $region42: #{resblock_forward.3} parent=31 // pred_check_branch
          %214 = sbr.rel (%p212) target = $region44
        $region43: #{resblock_forward.3} parent=31 // pred_region
          %216 = dma.done %s208, 1536
        $region44: #{resblock_forward.3} parent=31 // pred_fallthru
          _
        %217 = sfence
        %p218 = pneg %p50
        %p219 = pneg %p47
        %p220 = pneg %p71
        %p221 = pneg %p68
        %s222 = sand.u32 %s86, 1
        %s223 = scalar_lea.sflag [#allocation3], %s222
        %s224 = sand.u32 %s86, 1
        %s225 = smul.addr %s224, 96
        %s226 = scalar_lea.vmem [#allocation8], %s225
        %p227 = pneg %p99
        %p228 = pneg %p96
        %p229 = pneg %p127
        %p230 = pneg %p124
        %s231 = sand.u32 %s114, 1
        %s232 = scalar_lea.sflag [#allocation4], %s231
        %s233 = sand.u32 %s114, 1
        %s234 = smul.addr %s233, 256
        %s235 = scalar_lea.vmem [#allocation9], %s234
        %s236 = smul.u32 4, %s27
        %s237 = smul.u32 4, %s27
        %v238 = vld [vmem:[%s211] sm:$0xff]
        %v239 = vld [vmem:[%s211 + $0x8] sm:$0xff]
        %v240 = vld [vmem:[%s211 + $0x10] sm:$0xff]
        %v241 = vld [vmem:[%s211 + $0x18] sm:$0xff]
        %v242 = vld [vmem:[%s211 + $0x20] sm:$0xff]
        %v243 = vld [vmem:[%s211 + $0x28] sm:$0xff]
        %v244 = vld [vmem:[%s211 + $0x30] sm:$0xff]
        %v245 = vld [vmem:[%s211 + $0x38] sm:$0xff]
        %v246 = vld [vmem:[%s211 + $0x40] sm:$0xff]
        %v247 = vld [vmem:[%s211 + $0x48] sm:$0xff]
        %v248 = vld [vmem:[%s211 + $0x50] sm:$0xff]
        %v249 = vld [vmem:[%s211 + $0x58] sm:$0xff]
        %s250 = sld [smem:[#allocation2]]
        %v251 = vstv %s250
        %v252 = vmul.f32 %v251, %v238
        %v253 = vmul.f32 %v251, %v239
        %v254 = vmul.f32 %v251, %v240
        %v255 = vmul.f32 %v251, %v241
        %s256 = sld [smem:[#allocation2 + $0x1]]
        %v257 = vstv %s256
        %v258 = vmul.f32 %v257, %v242
        %v259 = vmul.f32 %v257, %v243
        %v260 = vmul.f32 %v257, %v244
        %v261 = vmul.f32 %v257, %v245
        %v262 = vadd.f32 %v252, %v258
        %v263 = vadd.f32 %v253, %v259
        %v264 = vadd.f32 %v254, %v260
        %v265 = vadd.f32 %v255, %v261
        %s266 = sld [smem:[#allocation2 + $0x2]]
        %v267 = vstv %s266
        %v268 = vmul.f32 %v267, %v246
        %v269 = vmul.f32 %v267, %v247
        %v270 = vmul.f32 %v267, %v248
        %v271 = vmul.f32 %v267, %v249
        %v272 = vadd.f32 %v262, %v268
        %v273 = vadd.f32 %v263, %v269
        %v274 = vadd.f32 %v264, %v270
        %v275 = vadd.f32 %v265, %v271
        %s276 = sld [smem:[#allocation6]]
        %v277 = vstv %s276
        %v278 = vadd.f32 %v272, %v277
        %v279 = vadd.f32 %v273, %v277
        %v280 = vadd.f32 %v274, %v277
        %v281 = vadd.f32 %v275, %v277
        %vm282 = vcmask 261120
        %283 = vst.msk [vmem:[%s235] sm:$0xff] %vm282, %v278
        %284 = vst.msk [vmem:[%s235 + $0x8] sm:$0xff] %vm282, %v279
        %285 = vst.msk [vmem:[%s235 + $0x10] sm:$0xff] %vm282, %v280
        %286 = vst.msk [vmem:[%s235 + $0x18] sm:$0xff] %vm282, %v281
        %s287 = sld [smem:[#allocation2 + $0x80]]
        %v288 = vstv %s287
        %v289 = vmul.f32 %v288, %v238
        %v290 = vmul.f32 %v288, %v239
        %v291 = vmul.f32 %v288, %v240
        %v292 = vmul.f32 %v288, %v241
        %s293 = sld [smem:[#allocation2 + $0x81]]
        %v294 = vstv %s293
        %v295 = vmul.f32 %v294, %v242
        %v296 = vmul.f32 %v294, %v243
        %v297 = vmul.f32 %v294, %v244
        %v298 = vmul.f32 %v294, %v245
        %v299 = vadd.f32 %v289, %v295
        %v300 = vadd.f32 %v290, %v296
        %v301 = vadd.f32 %v291, %v297
        %v302 = vadd.f32 %v292, %v298
        %s303 = sld [smem:[#allocation2 + $0x82]]
        %v304 = vstv %s303
        %v305 = vmul.f32 %v304, %v246
        %v306 = vmul.f32 %v304, %v247
        %v307 = vmul.f32 %v304, %v248
        %v308 = vmul.f32 %v304, %v249
        %v309 = vadd.f32 %v299, %v305
        %v310 = vadd.f32 %v300, %v306
        %v311 = vadd.f32 %v301, %v307
        %v312 = vadd.f32 %v302, %v308
        %s313 = sld [smem:[#allocation6 + $0x1]]
        %v314 = vstv %s313
        %v315 = vadd.f32 %v309, %v314
        %v316 = vadd.f32 %v310, %v314
        %v317 = vadd.f32 %v311, %v314
        %v318 = vadd.f32 %v312, %v314
        %s319 = scalar_lea.vmem %s235, 32 [#allocation9]
        %320 = vst.msk [vmem:[%s319] sm:$0xff] %vm282, %v315
        %321 = vst.msk [vmem:[%s319 + $0x8] sm:$0xff] %vm282, %v316
        %322 = vst.msk [vmem:[%s319 + $0x10] sm:$0xff] %vm282, %v317
        %323 = vst.msk [vmem:[%s319 + $0x18] sm:$0xff] %vm282, %v318
        %s324 = sld [smem:[#allocation2 + $0x100]]
        %v325 = vstv %s324
        %v326 = vmul.f32 %v325, %v238
        %v327 = vmul.f32 %v325, %v239
        %v328 = vmul.f32 %v325, %v240
        %v329 = vmul.f32 %v325, %v241
        %s330 = sld [smem:[#allocation2 + $0x101]]
        %v331 = vstv %s330
        %v332 = vmul.f32 %v331, %v242
        %v333 = vmul.f32 %v331, %v243
        %v334 = vmul.f32 %v331, %v244
        %v335 = vmul.f32 %v331, %v245
        %v336 = vadd.f32 %v326, %v332
        %v337 = vadd.f32 %v327, %v333
        %v338 = vadd.f32 %v328, %v334
        %v339 = vadd.f32 %v329, %v335
        %s340 = sld [smem:[#allocation2 + $0x102]]
        %v341 = vstv %s340
        %v342 = vmul.f32 %v341, %v246
        %v343 = vmul.f32 %v341, %v247
        %v344 = vmul.f32 %v341, %v248
        %v345 = vmul.f32 %v341, %v249
        %v346 = vadd.f32 %v336, %v342
        %v347 = vadd.f32 %v337, %v343
        %v348 = vadd.f32 %v338, %v344
        %v349 = vadd.f32 %v339, %v345
        %s350 = sld [smem:[#allocation6 + $0x2]]
        %v351 = vstv %s350
        %v352 = vadd.f32 %v346, %v351
        %v353 = vadd.f32 %v347, %v351
        %v354 = vadd.f32 %v348, %v351
        %v355 = vadd.f32 %v349, %v351
        %s356 = scalar_lea.vmem %s235, 64 [#allocation9]
        %357 = vst.msk [vmem:[%s356] sm:$0xff] %vm282, %v352
        %358 = vst.msk [vmem:[%s356 + $0x8] sm:$0xff] %vm282, %v353
        %359 = vst.msk [vmem:[%s356 + $0x10] sm:$0xff] %vm282, %v354
        %360 = vst.msk [vmem:[%s356 + $0x18] sm:$0xff] %vm282, %v355
        %s361 = sld [smem:[#allocation2 + $0x180]]
        %v362 = vstv %s361
        %v363 = vmul.f32 %v362, %v238
        %v364 = vmul.f32 %v362, %v239
        %v365 = vmul.f32 %v362, %v240
        %v366 = vmul.f32 %v362, %v241
        %s367 = sld [smem:[#allocation2 + $0x181]]
        %v368 = vstv %s367
        %v369 = vmul.f32 %v368, %v242
        %v370 = vmul.f32 %v368, %v243
        %v371 = vmul.f32 %v368, %v244
        %v372 = vmul.f32 %v368, %v245
        %v373 = vadd.f32 %v363, %v369
        %v374 = vadd.f32 %v364, %v370
        %v375 = vadd.f32 %v365, %v371
        %v376 = vadd.f32 %v366, %v372
        %s377 = sld [smem:[#allocation2 + $0x182]]
        %v378 = vstv %s377
        %v379 = vmul.f32 %v378, %v246
        %v380 = vmul.f32 %v378, %v247
        %v381 = vmul.f32 %v378, %v248
        %v382 = vmul.f32 %v378, %v249
        %v383 = vadd.f32 %v373, %v379
        %v384 = vadd.f32 %v374, %v380
        %v385 = vadd.f32 %v375, %v381
        %v386 = vadd.f32 %v376, %v382
        %s387 = sld [smem:[#allocation6 + $0x3]]
        %v388 = vstv %s387
        %v389 = vadd.f32 %v383, %v388
        %v390 = vadd.f32 %v384, %v388
        %v391 = vadd.f32 %v385, %v388
        %v392 = vadd.f32 %v386, %v388
        %s393 = scalar_lea.vmem %s235, 96 [#allocation9]
        %394 = vst.msk [vmem:[%s393] sm:$0xff] %vm282, %v389
        %395 = vst.msk [vmem:[%s393 + $0x8] sm:$0xff] %vm282, %v390
        %396 = vst.msk [vmem:[%s393 + $0x10] sm:$0xff] %vm282, %v391
        %397 = vst.msk [vmem:[%s393 + $0x18] sm:$0xff] %vm282, %v392
        %s398 = sld [smem:[#allocation2 + $0x200]]
        %v399 = vstv %s398
        %v400 = vmul.f32 %v399, %v238
        %v401 = vmul.f32 %v399, %v239
        %v402 = vmul.f32 %v399, %v240
        %v403 = vmul.f32 %v399, %v241
        %s404 = sld [smem:[#allocation2 + $0x201]]
        %v405 = vstv %s404
        %v406 = vmul.f32 %v405, %v242
        %v407 = vmul.f32 %v405, %v243
        %v408 = vmul.f32 %v405, %v244
        %v409 = vmul.f32 %v405, %v245
        %v410 = vadd.f32 %v400, %v406
        %v411 = vadd.f32 %v401, %v407
        %v412 = vadd.f32 %v402, %v408
        %v413 = vadd.f32 %v403, %v409
        %s414 = sld [smem:[#allocation2 + $0x202]]
        %v415 = vstv %s414
        %v416 = vmul.f32 %v415, %v246
        %v417 = vmul.f32 %v415, %v247
        %v418 = vmul.f32 %v415, %v248
        %v419 = vmul.f32 %v415, %v249
        %v420 = vadd.f32 %v410, %v416
        %v421 = vadd.f32 %v411, %v417
        %v422 = vadd.f32 %v412, %v418
        %v423 = vadd.f32 %v413, %v419
        %s424 = sld [smem:[#allocation6 + $0x4]]
        %v425 = vstv %s424
        %v426 = vadd.f32 %v420, %v425
        %v427 = vadd.f32 %v421, %v425
        %v428 = vadd.f32 %v422, %v425
        %v429 = vadd.f32 %v423, %v425
        %s430 = scalar_lea.vmem %s235, 128 [#allocation9]
        %431 = vst.msk [vmem:[%s430] sm:$0xff] %vm282, %v426
        %432 = vst.msk [vmem:[%s430 + $0x8] sm:$0xff] %vm282, %v427
        %433 = vst.msk [vmem:[%s430 + $0x10] sm:$0xff] %vm282, %v428
        %434 = vst.msk [vmem:[%s430 + $0x18] sm:$0xff] %vm282, %v429
        %s435 = sld [smem:[#allocation2 + $0x280]]
        %v436 = vstv %s435
        %v437 = vmul.f32 %v436, %v238
        %v438 = vmul.f32 %v436, %v239
        %v439 = vmul.f32 %v436, %v240
        %v440 = vmul.f32 %v436, %v241
        %s441 = sld [smem:[#allocation2 + $0x281]]
        %v442 = vstv %s441
        %v443 = vmul.f32 %v442, %v242
        %v444 = vmul.f32 %v442, %v243
        %v445 = vmul.f32 %v442, %v244
        %v446 = vmul.f32 %v442, %v245
        %v447 = vadd.f32 %v437, %v443
        %v448 = vadd.f32 %v438, %v444
        %v449 = vadd.f32 %v439, %v445
        %v450 = vadd.f32 %v440, %v446
        %s451 = sld [smem:[#allocation2 + $0x282]]
        %v452 = vstv %s451
        %v453 = vmul.f32 %v452, %v246
        %v454 = vmul.f32 %v452, %v247
        %v455 = vmul.f32 %v452, %v248
        %v456 = vmul.f32 %v452, %v249
        %v457 = vadd.f32 %v447, %v453
        %v458 = vadd.f32 %v448, %v454
        %v459 = vadd.f32 %v449, %v455
        %v460 = vadd.f32 %v450, %v456
        %s461 = sld [smem:[#allocation6 + $0x5]]
        %v462 = vstv %s461
        %v463 = vadd.f32 %v457, %v462
        %v464 = vadd.f32 %v458, %v462
        %v465 = vadd.f32 %v459, %v462
        %v466 = vadd.f32 %v460, %v462
        %s467 = scalar_lea.vmem %s235, 160 [#allocation9]
        %468 = vst.msk [vmem:[%s467] sm:$0xff] %vm282, %v463
        %469 = vst.msk [vmem:[%s467 + $0x8] sm:$0xff] %vm282, %v464
        %470 = vst.msk [vmem:[%s467 + $0x10] sm:$0xff] %vm282, %v465
        %471 = vst.msk [vmem:[%s467 + $0x18] sm:$0xff] %vm282, %v466
        %s472 = sld [smem:[#allocation2 + $0x300]]
        %v473 = vstv %s472
        %v474 = vmul.f32 %v473, %v238
        %v475 = vmul.f32 %v473, %v239
        %v476 = vmul.f32 %v473, %v240
        %v477 = vmul.f32 %v473, %v241
        %s478 = sld [smem:[#allocation2 + $0x301]]
        %v479 = vstv %s478
        %v480 = vmul.f32 %v479, %v242
        %v481 = vmul.f32 %v479, %v243
        %v482 = vmul.f32 %v479, %v244
        %v483 = vmul.f32 %v479, %v245
        %v484 = vadd.f32 %v474, %v480
        %v485 = vadd.f32 %v475, %v481
        %v486 = vadd.f32 %v476, %v482
        %v487 = vadd.f32 %v477, %v483
        %s488 = sld [smem:[#allocation2 + $0x302]]
        %v489 = vstv %s488
        %v490 = vmul.f32 %v489, %v246
        %v491 = vmul.f32 %v489, %v247
        %v492 = vmul.f32 %v489, %v248
        %v493 = vmul.f32 %v489, %v249
        %v494 = vadd.f32 %v484, %v490
        %v495 = vadd.f32 %v485, %v491
        %v496 = vadd.f32 %v486, %v492
        %v497 = vadd.f32 %v487, %v493
        %s498 = sld [smem:[#allocation6 + $0x6]]
        %v499 = vstv %s498
        %v500 = vadd.f32 %v494, %v499
        %v501 = vadd.f32 %v495, %v499
        %v502 = vadd.f32 %v496, %v499
        %v503 = vadd.f32 %v497, %v499
        %s504 = scalar_lea.vmem %s235, 192 [#allocation9]
        %505 = vst.msk [vmem:[%s504] sm:$0xff] %vm282, %v500
        %506 = vst.msk [vmem:[%s504 + $0x8] sm:$0xff] %vm282, %v501
        %507 = vst.msk [vmem:[%s504 + $0x10] sm:$0xff] %vm282, %v502
        %508 = vst.msk [vmem:[%s504 + $0x18] sm:$0xff] %vm282, %v503
        %s509 = sld [smem:[#allocation2 + $0x380]]
        %v510 = vstv %s509
        %v511 = vmul.f32 %v510, %v238
        %v512 = vmul.f32 %v510, %v239
        %v513 = vmul.f32 %v510, %v240
        %v514 = vmul.f32 %v510, %v241
        %s515 = sld [smem:[#allocation2 + $0x381]]
        %v516 = vstv %s515
        %v517 = vmul.f32 %v516, %v242
        %v518 = vmul.f32 %v516, %v243
        %v519 = vmul.f32 %v516, %v244
        %v520 = vmul.f32 %v516, %v245
        %v521 = vadd.f32 %v511, %v517
        %v522 = vadd.f32 %v512, %v518
        %v523 = vadd.f32 %v513, %v519
        %v524 = vadd.f32 %v514, %v520
        %s525 = sld [smem:[#allocation2 + $0x382]]
        %v526 = vstv %s525
        %v527 = vmul.f32 %v526, %v246
        %v528 = vmul.f32 %v526, %v247
        %v529 = vmul.f32 %v526, %v248
        %v530 = vmul.f32 %v526, %v249
        %v531 = vadd.f32 %v521, %v527
        %v532 = vadd.f32 %v522, %v528
        %v533 = vadd.f32 %v523, %v529
        %v534 = vadd.f32 %v524, %v530
        %s535 = sld [smem:[#allocation6 + $0x7]]
        %v536 = vstv %s535
        %v537 = vadd.f32 %v531, %v536
        %v538 = vadd.f32 %v532, %v536
        %v539 = vadd.f32 %v533, %v536
        %v540 = vadd.f32 %v534, %v536
        %s541 = scalar_lea.vmem %s235, 224 [#allocation9]
        %542 = vst.msk [vmem:[%s541] sm:$0xff] %vm282, %v537
        %543 = vst.msk [vmem:[%s541 + $0x8] sm:$0xff] %vm282, %v538
        %544 = vst.msk [vmem:[%s541 + $0x10] sm:$0xff] %vm282, %v539
        %545 = vst.msk [vmem:[%s541 + $0x18] sm:$0xff] %vm282, %v540
        %s546 = sand.u32 %s114, 1
        %s547 = scalar_lea.sflag [#allocation4], %s546
        %s548 = sand.u32 %s114, 1
        %s549 = smul.addr %s548, 256
        %s550 = scalar_lea.vmem [#allocation9], %s549
        // Predicated region
        $region45: #{resblock_forward.3} parent=31 // pred_check
          %p551 = pneg %p124
        $region46: #{resblock_forward.3} parent=31 // pred_check_branch
          %553 = sbr.rel (%p551) target = $region48
        $region47: #{resblock_forward.3} parent=31 // pred_region
          %s554 = smul.u32 4, %s27
          %556 = vsyncadd %s547, 0
          %s557 = smul.addr %s26, 32
          %s558 = sadd.s32 %s554, %s557
          %s559 = smul.addr %s558, 8
          %s560 = scalar_lea.hbm %s3, %s559
          %s561 = sshll.u32 %s550, 4
          %s562 = int_to_ptr.vmem [resolvable:$true] %s561
          %s563 = sshll.u32 %s560, 4
          %s564 = int_to_ptr.hbm [resolvable:$true] %s563
          %569 = dma.vmem_to_hbm [thread:$0]  %s562, 4096, %s564, %s547, 128, 128, 8
        $region48: #{resblock_forward.3} parent=31 // pred_fallthru
          _
      $region32: #{resblock_forward.3} parent=5 // pred_fallthru
        _
      %p570 = scmp.le.s32.totalorder 2, %s17
      // Predicated region
      $region49: #{resblock_forward.3} parent=5 // pred_check
        %p571 = pneg %p570
      $region50: #{resblock_forward.3} parent=5 // pred_check_branch
        %573 = sbr.rel (%p571) target = $region52
      $region51: #{resblock_forward.3} parent=5 // pred_region
        %s574 = ssub.s32 %s17, 2
        // Predicated region
        $region53: #{resblock_forward.3} parent=51 // pred_check
          %p575 = pneg %p130
        $region54: #{resblock_forward.3} parent=51 // pred_check_branch
          %577 = sbr.rel (%p575) target = $region56
        $region55: #{resblock_forward.3} parent=51 // pred_region
          %s578 = sand.u32 %s115, 1
          %s579 = scalar_lea.sflag [#allocation4], %s578
          %s580 = sand.u32 %s115, 1
          %s581 = smul.addr %s580, 256
          %s582 = scalar_lea.vmem [#allocation9], %s581
          %584 = dma.done %s579, 4096
        $region56: #{resblock_forward.3} parent=51 // pred_fallthru
          _
      $region52: #{resblock_forward.3} parent=5 // pred_fallthru
        _
    $region6: #{resblock_forward.3} parent=1 // loop_footer
      %s21 = sadd.s32 1, %s17
    $region7: #{resblock_forward.3} parent=1 // loop_footer_branch
      %16 = sbr.rel target = $region3
    $region8: #{resblock_forward.3} parent=1 // loop_exit
      _
    %585 = vsyncpa [#allocation3], 1
    %s586 = scalar_lea.sflag [#allocation3], 1
    %587 = vsyncpa %s586, 1
    %588 = vsyncpa [#allocation4], 1
    %s589 = scalar_lea.sflag [#allocation4], 1
    %590 = vsyncpa %s589, 1
    %591 = vsyncpa [#allocation5], 1
    %s592 = scalar_lea.sflag [#allocation5], 1
    %593 = vsyncpa %s592, 1
    %594 = vsyncpa [#allocation7], 1

</llo_original>
